<compile_context>
chip_gen: v5e
topology: v5e:2x2
jax: 0.10.0
libtpu: 0.0.40
codegen_flags: <defaults>
</compile_context>

<pallas_src>
import math

import jax
import jax.numpy as jnp
from jax.experimental import pallas as pl
from jax.experimental.pallas import tpu as pltpu

LEAKY_SLOPE = 0.01  # nn.LeakyReLU() default negative_slope


def _leaky_relu(x):
    return jnp.where(x >= 0, x, LEAKY_SLOPE * x)


def coord_mlp_kernel(x_ref,            # (1, c_in, tile) f32 coords block
                     w_lff_ref, b_lff_ref,   # (F, c_in) f32, (F, 1) f32
                     w1_ref, b1_ref,         # (d2, F) bf16, (d2, 1) f32
                     wh_ref, bh_ref,         # (L, d2, d2) bf16, (L, d2, 1) f32
                     wo_ref, bo_ref,         # (3, d2) bf16, (3, 1) f32
                     o_ref):                 # (1, 3, tile) f32
    x = x_ref[0]                        # (c_in, tile) f32
    c_in = x.shape[0]
    mm_dtype = w1_ref.dtype

    # --- LFF: 1x1 conv (c_in -> F) + sin, done on the VPU (K=c_in=2 would
    # waste an entire MXU pass). Two broadcast multiply-adds + bias.
    w_lff = w_lff_ref[...]
    pre = b_lff_ref[...] + w_lff[:, 0:1] * x[0:1, :]
    for c in range(1, c_in):
        pre = pre + w_lff[:, c:c + 1] * x[c:c + 1, :]
    h = jnp.sin(pre)                    # (F, tile) f32

    # --- Hidden layer F -> d2 (MXU, bf16 operands, f32 accumulation).
    h = _leaky_relu(
        jnp.dot(w1_ref[...], h.astype(mm_dtype),
                preferred_element_type=jnp.float32) + b1_ref[...])

    # --- num_layers identical d2 -> d2 layers (statically unrolled).
    for l in range(wh_ref.shape[0]):
        h = _leaky_relu(
            jnp.dot(wh_ref[l], h.astype(mm_dtype),
                    preferred_element_type=jnp.float32) + bh_ref[l])

    # --- Output conv d2 -> 3 (no activation). Lane-dense store.
    o_ref[0] = (jnp.dot(wo_ref[...], h.astype(mm_dtype),
                        preferred_element_type=jnp.float32)
                + bo_ref[...]).astype(o_ref.dtype)


def init_params(key, internal_dim=32, num_layers=3,
                num_input_channels=2, num_freqs=30):
    """Deterministic synthetic init mimicking ConLinear uniform init.

    Weights stored as (C_out, C_in) (PyTorch Conv2d 1x1 layout, squeezed);
    biases as (C_out, 1).
    """
    d2 = internal_dim * 2
    layer_dims = [(num_input_channels, num_freqs, True)]   # LFF conv (is_first)
    layer_dims.append((num_freqs, d2, False))
    for _ in range(num_layers):
        layer_dims.append((d2, d2, False))
    layer_dims.append((d2, 3, False))

    params = []
    for (cin, cout, is_first) in layer_dims:
        key, kw, kb = jax.random.split(key, 3)
        w_bound = math.sqrt((9.0 if is_first else 3.0) / cin)
        w = jax.random.uniform(kw, (cout, cin), jnp.float32, -w_bound, w_bound)
        b_bound = 1.0 / math.sqrt(cin)
        b = jax.random.uniform(kb, (cout, 1), jnp.float32, -b_bound, b_bound)
        params.append((w, b))
    return params


def coord_mlp_forward(coords_nchw, params, *, tile_n=8192,
                      matmul_dtype=jnp.bfloat16):
    """CoordMLP forward with a Pallas kernel. coords_nchw: (B, 2, H, W) f32."""
    B, c_in, H, W = coords_nchw.shape
    hw = H * W

    (w_lff, b_lff) = params[0]
    (w1, b1) = params[1]
    hidden = params[2:-1]
    (wo, bo) = params[-1]
    assert len(hidden) >= 1, "expects num_layers >= 1"

    num_freqs = w_lff.shape[0]
    d2 = w1.shape[0]
    n_hidden = len(hidden)

    # Cast MXU weights once; LFF weights stay f32 (VPU path). Biases stay f32.
    w1c = w1.astype(matmul_dtype)
    woc = wo.astype(matmul_dtype)
    wh = jnp.stack([w for (w, _) in hidden]).astype(matmul_dtype)   # (L, d2, d2)
    bh = jnp.stack([b for (_, b) in hidden])                        # (L, d2, 1)

    # Pixel tile: as large as requested (amortizes per-step overhead), clamped
    # to the (128-aligned) image size, always a multiple of 128 lanes.
    hw_128 = pl.cdiv(hw, 128) * 128
    tile = max(128, (min(tile_n, hw_128) // 128) * 128)
    hw_padded = pl.cdiv(hw, tile) * tile

    # NCHW is already channel-major: just flatten the spatial dims, no transpose.
    x = coords_nchw.reshape(B, c_in, hw).astype(jnp.float32)
    if hw_padded != hw:
        x = jnp.pad(x, ((0, 0), (0, 0), (0, hw_padded - hw)))

    grid = (B, hw_padded // tile)

    n_pix = B * hw
    flops = 2 * n_pix * (c_in * num_freqs + num_freqs * d2
                         + n_hidden * d2 * d2 + d2 * 3)
    param_bytes = sum(int(a.size) * a.dtype.itemsize
                      for a in (w_lff, b_lff, w1c, b1, wh, bh, woc, bo))
    cost = pl.CostEstimate(
        flops=flops,
        transcendentals=n_pix * num_freqs,
        bytes_accessed=4 * B * hw_padded * (c_in + 3) + param_bytes,
    )

    def x_map(b, i):
        return (b, 0, i)

    def o_map(b, i):
        return (b, 0, i)

    def w2d_map(b, i):
        return (0, 0)

    def w3d_map(b, i):
        return (0, 0, 0)

    out = pl.pallas_call(
        coord_mlp_kernel,
        out_shape=jax.ShapeDtypeStruct((B, 3, hw_padded), jnp.float32),
        grid_spec=pltpu.PrefetchScalarGridSpec(
            num_scalar_prefetch=0,
            grid=grid,
            in_specs=[
                pl.BlockSpec((1, c_in, tile), x_map),
                pl.BlockSpec(w_lff.shape, w2d_map),
                pl.BlockSpec(b_lff.shape, w2d_map),
                pl.BlockSpec(w1c.shape, w2d_map),
                pl.BlockSpec(b1.shape, w2d_map),
                pl.BlockSpec(wh.shape, w3d_map),
                pl.BlockSpec(bh.shape, w3d_map),
                pl.BlockSpec(woc.shape, w2d_map),
                pl.BlockSpec(bo.shape, w2d_map),
            ],
            out_specs=pl.BlockSpec((1, 3, tile), o_map),
        ),
        compiler_params=pltpu.CompilerParams(
            dimension_semantics=("parallel", "parallel")),
        cost_estimate=cost,
    )(x, w_lff, b_lff, w1c, b1, wh, bh, woc, bo)

    return out[:, :, :hw].reshape(B, 3, H, W)


def coord_mlp_reference(coords_nchw, params, matmul_dtype=jnp.float32):
    """Pure-JAX reference. matmul_dtype=bf16 emulates the kernel's MXU operands."""
    B, c_in, H, W = coords_nchw.shape
    x = coords_nchw.reshape(B, c_in, H * W).astype(jnp.float32)
    (w_lff, b_lff) = params[0]
    h = jnp.sin(jnp.einsum('oc,bcn->bon', w_lff, x,
                           preferred_element_type=jnp.float32) + b_lff)
    for (w, b) in params[1:-1]:
        h = _leaky_relu(
            jnp.einsum('oc,bcn->bon', w.astype(matmul_dtype),
                       h.astype(matmul_dtype),
                       preferred_element_type=jnp.float32) + b)
    (wo, bo) = params[-1]
    out = jnp.einsum('oc,bcn->bon', wo.astype(matmul_dtype),
                     h.astype(matmul_dtype),
                     preferred_element_type=jnp.float32) + bo
    return out.reshape(B, 3, H, W)


if __name__ == "__main__":
    key = jax.random.PRNGKey(0)
    k_coords, k_params = jax.random.split(key)

    # Small shapes: batch=2, 2 coordinate channels, 16x16 spatial, internal_dim=32.
    B, H, W = 2, 16, 16
    coords = jax.random.uniform(k_coords, (B, 2, H, W), jnp.float32, -1.0, 1.0)
    params = init_params(k_params, internal_dim=32, num_layers=3,
                         num_input_channels=2, num_freqs=30)

    out = jax.block_until_ready(coord_mlp_forward(coords, params))
    assert out.shape == (B, 3, H, W), out.shape

    # Tight check vs a reference that applies the same bf16 MXU-operand rounding.
    ref_bf16 = coord_mlp_reference(coords, params, matmul_dtype=jnp.bfloat16)
    assert jnp.allclose(out, ref_bf16, atol=2e-3, rtol=2e-3), \
        "kernel mismatch vs bf16-emulating reference"

    # Loose check vs the full-f32 module semantics (bf16 operands are the only
    # intended accuracy trade-off).
    ref_f32 = coord_mlp_reference(coords, params, matmul_dtype=jnp.float32)
    assert jnp.allclose(out, ref_f32, atol=1e-1, rtol=1e-1), \
        "kernel drift vs f32 reference exceeds bf16 tolerance"

    print("KERNEL_OK")
</pallas_src>

<mosaic_0001>
module attributes {stable_mosaic.version = 11 : i64} {
  func.func @coord_mlp_kernel(%arg0: i32, %arg1: i32, %arg2: memref<1x2x256xf32, #tpu.memory_space<vmem>>, %arg3: memref<30x2xf32, #tpu.memory_space<vmem>>, %arg4: memref<30x1xf32, #tpu.memory_space<vmem>>, %arg5: memref<64x30xbf16, #tpu.memory_space<vmem>>, %arg6: memref<64x1xf32, #tpu.memory_space<vmem>>, %arg7: memref<3x64x64xbf16, #tpu.memory_space<vmem>>, %arg8: memref<3x64x1xf32, #tpu.memory_space<vmem>>, %arg9: memref<3x64xbf16, #tpu.memory_space<vmem>>, %arg10: memref<3x1xf32, #tpu.memory_space<vmem>>, %arg11: memref<1x3x256xf32, #tpu.memory_space<vmem>>) attributes {dimension_semantics = [#tpu.dimension_semantics<parallel>, #tpu.dimension_semantics<parallel>], iteration_bounds = array<i64: 2, 1>, scalar_prefetch = 0 : i64, scratch_operands = 0 : i64, tpu.core_type = #tpu.core_type<tc>, window_params = [{transform_indices = @transform_0, window_bounds = array<i64: 1, 2, 256>}, {pipeline_mode = #tpu.pipeline_mode<synchronous>, transform_indices = @transform_1, window_bounds = array<i64: 30, 2>}, {pipeline_mode = #tpu.pipeline_mode<synchronous>, transform_indices = @transform_2, window_bounds = array<i64: 30, 1>}, {pipeline_mode = #tpu.pipeline_mode<synchronous>, transform_indices = @transform_3, window_bounds = array<i64: 64, 30>}, {pipeline_mode = #tpu.pipeline_mode<synchronous>, transform_indices = @transform_4, window_bounds = array<i64: 64, 1>}, {pipeline_mode = #tpu.pipeline_mode<synchronous>, transform_indices = @transform_5, window_bounds = array<i64: 3, 64, 64>}, {pipeline_mode = #tpu.pipeline_mode<synchronous>, transform_indices = @transform_6, window_bounds = array<i64: 3, 64, 1>}, {pipeline_mode = #tpu.pipeline_mode<synchronous>, transform_indices = @transform_7, window_bounds = array<i64: 3, 64>}, {pipeline_mode = #tpu.pipeline_mode<synchronous>, transform_indices = @transform_8, window_bounds = array<i64: 3, 1>}, {transform_indices = @transform_9, window_bounds = array<i64: 1, 3, 256>}]} {
    %c0 = arith.constant 0 : index
    %c0_0 = arith.constant 0 : index
    %c0_1 = arith.constant 0 : index
    %0 = vector.load %arg2[%c0, %c0_0, %c0_1] : memref<1x2x256xf32, #tpu.memory_space<vmem>>, vector<1x2x256xf32>
    %1 = vector.shape_cast %0 : vector<1x2x256xf32> to vector<2x256xf32>
    %c0_2 = arith.constant 0 : index
    %c0_3 = arith.constant 0 : index
    %2 = vector.load %arg3[%c0_2, %c0_3] : memref<30x2xf32, #tpu.memory_space<vmem>>, vector<30x2xf32>
    %c0_4 = arith.constant 0 : index
    %c0_5 = arith.constant 0 : index
    %3 = vector.load %arg4[%c0_4, %c0_5] : memref<30x1xf32, #tpu.memory_space<vmem>>, vector<30x1xf32>
    %4 = vector.extract_strided_slice %2 {offsets = [0, 0], sizes = [30, 1], strides = [1, 1]} : vector<30x2xf32> to vector<30x1xf32>
    %5 = vector.extract_strided_slice %1 {offsets = [0, 0], sizes = [1, 256], strides = [1, 1]} : vector<2x256xf32> to vector<1x256xf32>
    %6 = vector.broadcast %4 : vector<30x1xf32> to vector<30x256xf32>
    %7 = vector.broadcast %5 : vector<1x256xf32> to vector<30x256xf32>
    %8 = arith.mulf %6, %7 : vector<30x256xf32>
    %9 = vector.broadcast %3 : vector<30x1xf32> to vector<30x256xf32>
    %10 = arith.addf %9, %8 : vector<30x256xf32>
    %11 = vector.extract_strided_slice %2 {offsets = [0, 1], sizes = [30, 1], strides = [1, 1]} : vector<30x2xf32> to vector<30x1xf32>
    %12 = vector.extract_strided_slice %1 {offsets = [1, 0], sizes = [1, 256], strides = [1, 1]} : vector<2x256xf32> to vector<1x256xf32>
    %13 = vector.broadcast %11 : vector<30x1xf32> to vector<30x256xf32>
    %14 = vector.broadcast %12 : vector<1x256xf32> to vector<30x256xf32>
    %15 = arith.mulf %13, %14 : vector<30x256xf32>
    %16 = arith.addf %10, %15 : vector<30x256xf32>
    %17 = math.sin %16 : vector<30x256xf32>
    %c0_6 = arith.constant 0 : index
    %c0_7 = arith.constant 0 : index
    %18 = vector.load %arg5[%c0_6, %c0_7] : memref<64x30xbf16, #tpu.memory_space<vmem>>, vector<64x30xbf16>
    %19 = arith.truncf %17 : vector<30x256xf32> to vector<30x256xbf16>
    %cst = arith.constant dense<0.000000e+00> : vector<64x256xf32>
    %20 = tpu.matmul %18, %19, %cst {dimension_numbers = #tpu.dot_dimension_numbers<[1], [0], [0], [1], [0, 0, 1, 1], [], []>} : vector<64x30xbf16>, vector<30x256xbf16>, vector<64x256xf32> -> vector<64x256xf32>
    %c0_8 = arith.constant 0 : index
    %c0_9 = arith.constant 0 : index
    %21 = vector.load %arg6[%c0_8, %c0_9] : memref<64x1xf32, #tpu.memory_space<vmem>>, vector<64x1xf32>
    %22 = vector.broadcast %21 : vector<64x1xf32> to vector<64x256xf32>
    %23 = arith.addf %20, %22 : vector<64x256xf32>
    %cst_10 = arith.constant 0.000000e+00 : f32
    %24 = vector.broadcast %cst_10 : f32 to vector<64x256xf32>
    %25 = arith.cmpf oge, %23, %24 : vector<64x256xf32>
    %cst_11 = arith.constant 0.00999999977 : f32
    %26 = vector.broadcast %cst_11 : f32 to vector<64x256xf32>
    %27 = arith.mulf %26, %23 : vector<64x256xf32>
    %28 = arith.select %25, %23, %27 : vector<64x256xi1>, vector<64x256xf32>
    %c0_12 = arith.constant 0 : index
    %c0_13 = arith.constant 0 : index
    %c0_14 = arith.constant 0 : index
    %29 = vector.load %arg7[%c0_12, %c0_13, %c0_14] : memref<3x64x64xbf16, #tpu.memory_space<vmem>>, vector<1x64x64xbf16>
    %30 = vector.shape_cast %29 : vector<1x64x64xbf16> to vector<64x64xbf16>
    %31 = arith.truncf %28 : vector<64x256xf32> to vector<64x256xbf16>
    %cst_15 = arith.constant dense<0.000000e+00> : vector<64x256xf32>
    %32 = tpu.matmul %30, %31, %cst_15 {dimension_numbers = #tpu.dot_dimension_numbers<[1], [0], [0], [1], [0, 0, 1, 1], [], []>} : vector<64x64xbf16>, vector<64x256xbf16>, vector<64x256xf32> -> vector<64x256xf32>
    %c0_16 = arith.constant 0 : index
    %c0_17 = arith.constant 0 : index
    %c0_18 = arith.constant 0 : index
    %33 = vector.load %arg8[%c0_16, %c0_17, %c0_18] : memref<3x64x1xf32, #tpu.memory_space<vmem>>, vector<1x64x1xf32>
    %34 = vector.shape_cast %33 : vector<1x64x1xf32> to vector<64x1xf32>
    %35 = vector.broadcast %34 : vector<64x1xf32> to vector<64x256xf32>
    %36 = arith.addf %32, %35 : vector<64x256xf32>
    %cst_19 = arith.constant 0.000000e+00 : f32
    %37 = vector.broadcast %cst_19 : f32 to vector<64x256xf32>
    %38 = arith.cmpf oge, %36, %37 : vector<64x256xf32>
    %cst_20 = arith.constant 0.00999999977 : f32
    %39 = vector.broadcast %cst_20 : f32 to vector<64x256xf32>
    %40 = arith.mulf %39, %36 : vector<64x256xf32>
    %41 = arith.select %38, %36, %40 : vector<64x256xi1>, vector<64x256xf32>
    %c1 = arith.constant 1 : index
    %c0_21 = arith.constant 0 : index
    %c0_22 = arith.constant 0 : index
    %42 = vector.load %arg7[%c1, %c0_21, %c0_22] : memref<3x64x64xbf16, #tpu.memory_space<vmem>>, vector<1x64x64xbf16>
    %43 = vector.shape_cast %42 : vector<1x64x64xbf16> to vector<64x64xbf16>
    %44 = arith.truncf %41 : vector<64x256xf32> to vector<64x256xbf16>
    %cst_23 = arith.constant dense<0.000000e+00> : vector<64x256xf32>
    %45 = tpu.matmul %43, %44, %cst_23 {dimension_numbers = #tpu.dot_dimension_numbers<[1], [0], [0], [1], [0, 0, 1, 1], [], []>} : vector<64x64xbf16>, vector<64x256xbf16>, vector<64x256xf32> -> vector<64x256xf32>
    %c1_24 = arith.constant 1 : index
    %c0_25 = arith.constant 0 : index
    %c0_26 = arith.constant 0 : index
    %46 = vector.load %arg8[%c1_24, %c0_25, %c0_26] : memref<3x64x1xf32, #tpu.memory_space<vmem>>, vector<1x64x1xf32>
    %47 = vector.shape_cast %46 : vector<1x64x1xf32> to vector<64x1xf32>
    %48 = vector.broadcast %47 : vector<64x1xf32> to vector<64x256xf32>
    %49 = arith.addf %45, %48 : vector<64x256xf32>
    %cst_27 = arith.constant 0.000000e+00 : f32
    %50 = vector.broadcast %cst_27 : f32 to vector<64x256xf32>
    %51 = arith.cmpf oge, %49, %50 : vector<64x256xf32>
    %cst_28 = arith.constant 0.00999999977 : f32
    %52 = vector.broadcast %cst_28 : f32 to vector<64x256xf32>
    %53 = arith.mulf %52, %49 : vector<64x256xf32>
    %54 = arith.select %51, %49, %53 : vector<64x256xi1>, vector<64x256xf32>
    %c2 = arith.constant 2 : index
    %c0_29 = arith.constant 0 : index
    %c0_30 = arith.constant 0 : index
    %55 = vector.load %arg7[%c2, %c0_29, %c0_30] : memref<3x64x64xbf16, #tpu.memory_space<vmem>>, vector<1x64x64xbf16>
    %56 = vector.shape_cast %55 : vector<1x64x64xbf16> to vector<64x64xbf16>
    %57 = arith.truncf %54 : vector<64x256xf32> to vector<64x256xbf16>
    %cst_31 = arith.constant dense<0.000000e+00> : vector<64x256xf32>
    %58 = tpu.matmul %56, %57, %cst_31 {dimension_numbers = #tpu.dot_dimension_numbers<[1], [0], [0], [1], [0, 0, 1, 1], [], []>} : vector<64x64xbf16>, vector<64x256xbf16>, vector<64x256xf32> -> vector<64x256xf32>
    %c2_32 = arith.constant 2 : index
    %c0_33 = arith.constant 0 : index
    %c0_34 = arith.constant 0 : index
    %59 = vector.load %arg8[%c2_32, %c0_33, %c0_34] : memref<3x64x1xf32, #tpu.memory_space<vmem>>, vector<1x64x1xf32>
    %60 = vector.shape_cast %59 : vector<1x64x1xf32> to vector<64x1xf32>
    %61 = vector.broadcast %60 : vector<64x1xf32> to vector<64x256xf32>
    %62 = arith.addf %58, %61 : vector<64x256xf32>
    %cst_35 = arith.constant 0.000000e+00 : f32
    %63 = vector.broadcast %cst_35 : f32 to vector<64x256xf32>
    %64 = arith.cmpf oge, %62, %63 : vector<64x256xf32>
    %cst_36 = arith.constant 0.00999999977 : f32
    %65 = vector.broadcast %cst_36 : f32 to vector<64x256xf32>
    %66 = arith.mulf %65, %62 : vector<64x256xf32>
    %67 = arith.select %64, %62, %66 : vector<64x256xi1>, vector<64x256xf32>
    %c0_37 = arith.constant 0 : index
    %c0_38 = arith.constant 0 : index
    %68 = vector.load %arg9[%c0_37, %c0_38] : memref<3x64xbf16, #tpu.memory_space<vmem>>, vector<3x64xbf16>
    %69 = arith.truncf %67 : vector<64x256xf32> to vector<64x256xbf16>
    %cst_39 = arith.constant dense<0.000000e+00> : vector<3x256xf32>
    %70 = tpu.matmul %68, %69, %cst_39 {dimension_numbers = #tpu.dot_dimension_numbers<[1], [0], [0], [1], [0, 0, 1, 1], [], []>} : vector<3x64xbf16>, vector<64x256xbf16>, vector<3x256xf32> -> vector<3x256xf32>
    %c0_40 = arith.constant 0 : index
    %c0_41 = arith.constant 0 : index
    %71 = vector.load %arg10[%c0_40, %c0_41] : memref<3x1xf32, #tpu.memory_space<vmem>>, vector<3x1xf32>
    %72 = vector.broadcast %71 : vector<3x1xf32> to vector<3x256xf32>
    %73 = arith.addf %70, %72 : vector<3x256xf32>
    %c0_42 = arith.constant 0 : index
    %c0_43 = arith.constant 0 : index
    %c0_44 = arith.constant 0 : index
    %74 = vector.load %arg11[%c0_42, %c0_43, %c0_44] : memref<1x3x256xf32, #tpu.memory_space<vmem>>, vector<1x3x256xf32>
    %75 = vector.shape_cast %74 : vector<1x3x256xf32> to vector<3x256xf32>
    %76 = vector.shape_cast %73 : vector<3x256xf32> to vector<1x3x256xf32>
    tpu.vector_store %arg11[%c0_42, %c0_43, %c0_44], %76 {strides = array<i32>} : memref<1x3x256xf32, #tpu.memory_space<vmem>>, vector<1x3x256xf32>,
    return
  }
  func.func @transform_0(%arg0: i32, %arg1: i32) -> (i32, i32, i32) {
    %c0_i32 = arith.constant 0 : i32
    %c0_i32_0 = arith.constant 0 : i32
    return %arg0, %c0_i32, %arg1 : i32, i32, i32
  }
  func.func @transform_1(%arg0: i32, %arg1: i32) -> (i32, i32) {
    %c0_i32 = arith.constant 0 : i32
    %c0_i32_0 = arith.constant 0 : i32
    %c0_i32_1 = arith.constant 0 : i32
    return %c0_i32, %c0_i32_0 : i32, i32
  }
  func.func @transform_2(%arg0: i32, %arg1: i32) -> (i32, i32) {
    %c0_i32 = arith.constant 0 : i32
    %c0_i32_0 = arith.constant 0 : i32
    %c0_i32_1 = arith.constant 0 : i32
    return %c0_i32, %c0_i32_0 : i32, i32
  }
  func.func @transform_3(%arg0: i32, %arg1: i32) -> (i32, i32) {
    %c0_i32 = arith.constant 0 : i32
    %c0_i32_0 = arith.constant 0 : i32
    %c0_i32_1 = arith.constant 0 : i32
    return %c0_i32, %c0_i32_0 : i32, i32
  }
  func.func @transform_4(%arg0: i32, %arg1: i32) -> (i32, i32) {
    %c0_i32 = arith.constant 0 : i32
    %c0_i32_0 = arith.constant 0 : i32
    %c0_i32_1 = arith.constant 0 : i32
    return %c0_i32, %c0_i32_0 : i32, i32
  }
  func.func @transform_5(%arg0: i32, %arg1: i32) -> (i32, i32, i32) {
    %c0_i32 = arith.constant 0 : i32
    %c0_i32_0 = arith.constant 0 : i32
    %c0_i32_1 = arith.constant 0 : i32
    %c0_i32_2 = arith.constant 0 : i32
    return %c0_i32, %c0_i32_0, %c0_i32_1 : i32, i32, i32
  }
  func.func @transform_6(%arg0: i32, %arg1: i32) -> (i32, i32, i32) {
    %c0_i32 = arith.constant 0 : i32
    %c0_i32_0 = arith.constant 0 : i32
    %c0_i32_1 = arith.constant 0 : i32
    %c0_i32_2 = arith.constant 0 : i32
    return %c0_i32, %c0_i32_0, %c0_i32_1 : i32, i32, i32
  }
  func.func @transform_7(%arg0: i32, %arg1: i32) -> (i32, i32) {
    %c0_i32 = arith.constant 0 : i32
    %c0_i32_0 = arith.constant 0 : i32
    %c0_i32_1 = arith.constant 0 : i32
    return %c0_i32, %c0_i32_0 : i32, i32
  }
  func.func @transform_8(%arg0: i32, %arg1: i32) -> (i32, i32) {
    %c0_i32 = arith.constant 0 : i32
    %c0_i32_0 = arith.constant 0 : i32
    %c0_i32_1 = arith.constant 0 : i32
    return %c0_i32, %c0_i32_0 : i32, i32
  }
  func.func @transform_9(%arg0: i32, %arg1: i32) -> (i32, i32, i32) {
    %c0_i32 = arith.constant 0 : i32
    %c0_i32_0 = arith.constant 0 : i32
    return %arg0, %c0_i32, %arg1 : i32, i32, i32
  }
}

</mosaic_0001>

<llo_original>
// kernel: tpu_custom_call.1
$region0: #{tpu_custom_call.1}
  #allocation0 [shape = 'u32[]', space=smem, size = 0x4, offset = 0x4, fixed_abs, tag = 'smem constant byte address 0x4 - core index']
  #allocation1 [shape = 'u32[72,128]{1,0:T(1,128)}', space=vmem, size = 0x9000, scoped, tag = 'internal scratch']
  %s0 = inlined_call_operand.vmem [shape: f32[2,2,256], index: 0, kind: input, shape index: {}]
  %s1 = inlined_call_operand.vmem [shape: f32[30,2], index: 1, kind: input, shape index: {}]
  %s2 = inlined_call_operand.vmem [shape: f32[30,1], index: 2, kind: input, shape index: {}]
  %s3 = inlined_call_operand.vmem [shape: bf16[64,30], index: 3, kind: input, shape index: {}]
  %s4 = inlined_call_operand.vmem [shape: f32[64,1], index: 4, kind: input, shape index: {}]
  %s5 = inlined_call_operand.vmem [shape: bf16[3,64,64], index: 5, kind: input, shape index: {}]
  %s6 = inlined_call_operand.vmem [shape: f32[3,64,1], index: 6, kind: input, shape index: {}]
  %s7 = inlined_call_operand.vmem [shape: bf16[3,64], index: 7, kind: input, shape index: {}]
  %s8 = inlined_call_operand.vmem [shape: f32[3,1], index: 8, kind: input, shape index: {}]
  %s9 = inlined_call_operand.vmem [shape: f32[2,3,256], index: 9, kind: output, shape index: {}]
  %s10 = sld [smem:[#allocation0]]
  $region69: #{tpu_custom_call.1} parent=0
    _
  %s12 = ssub.s32 1, %s10
  %s13 = scalar_select 0, %s12, %s10
  loop: start=0, step=1, limit=4
  $region2: #{tpu_custom_call.1} parent=0 // loop_pre_header
    _
  $region3: #{tpu_custom_call.1} parent=0 // loop_header
    %s15 = sphi 0, %s19
    %p16 = scmp.ge.s32.totalorder %s15, 4
    %s22 = sphi 0, %s34
    %s23 = sphi 0, %s30
    %s24 = sphi 0, %s22
    %s25 = sphi 0, %s23
    %s26 = sphi 0, %s24
    %s27 = sphi 0, %s25
    %s39 = sphi 0, %s41
    %s42 = sphi 0, %s39
    %s43 = sphi 0, %s42
    %s59 = sphi 0, %s43
    %s63 = sphi 0, %s63
    %s65 = sphi 0, %s63
    %s66 = sphi 0, %s65
    %s80 = sphi 0, %s66
    %s84 = sphi 0, %s84
    %s86 = sphi 0, %s84
    %s87 = sphi 0, %s86
    %s101 = sphi 0, %s87
    %s105 = sphi 0, %s105
    %s107 = sphi 0, %s105
    %s108 = sphi 0, %s107
    %s122 = sphi 0, %s108
    %s126 = sphi 0, %s126
    %s128 = sphi 0, %s126
    %s129 = sphi 0, %s128
    %s143 = sphi 0, %s129
    %s147 = sphi 0, %s147
    %s149 = sphi 0, %s147
    %s150 = sphi 0, %s149
    %s164 = sphi 0, %s150
    %s168 = sphi 0, %s168
    %s170 = sphi 0, %s168
    %s171 = sphi 0, %s170
    %s185 = sphi 0, %s171
    %s189 = sphi 0, %s189
    %s191 = sphi 0, %s189
    %s192 = sphi 0, %s191
    %s206 = sphi 0, %s192
    %s210 = sphi 0, %s210
    %s212 = sphi 0, %s210
    %s213 = sphi 0, %s212
    %s227 = sphi 0, %s213
    %s235 = sphi 0, %s237
    %s238 = sphi 0, %s235
    %s239 = sphi 0, %s238
    %s255 = sphi 0, %s239
  $region4: #{tpu_custom_call.1} parent=0 // loop_header_branch
    %18 = sbr.rel (%p16) target = $region8
  $region5: #{tpu_custom_call.1} parent=0 // loop_body
    %s20 = ssub.s32 %s15, 1
    %s21 = ssub.s32 %s15, 2
    %s28 = sadd.s32 1, %s23
    %p29 = scmp.ge.s32.totalorder %s28, 1
    %s30 = scalar_select %p29, 0, %s28
    %s31 = sadd.s32 1, %s22
    %s32 = scalar_select %p29, %s31, %s22
    %p33 = scmp.ge.s32.totalorder %s32, 2
    %s34 = scalar_select %p33, 0, %s32
    %s35 = ssub.s32 %s22, %s34
    %s36 = ssub.s32 %s23, %s30
    %s37 = sor.u32 %s35, %s36
    %p38 = scmp.eq.s32.totalorder %s37, 0
    %s40 = sadd.s32 %s39, 1
    %s41 = scalar_select %p38, %s39, %s40
    %p44 = pneg %p38
    %p45 = scmp.eq.s32.totalorder %s15, 1
    %p46 = por %p44, %p45
    %p47 = scmp.ne.s32.totalorder %s39, %s42
    %p48 = scmp.eq.s32.totalorder %s15, 0
    %p49 = por %p47, %p48
    %p50 = scmp.ne.s32.totalorder %s39, %s42
    %p51 = scmp.eq.s32.totalorder %s20, 1
    %p52 = por %p50, %p51
    %p53 = scmp.ne.s32.totalorder %s42, %s43
    %p54 = scmp.eq.s32.totalorder %s20, 0
    %p55 = por %p53, %p54
    %p56 = scmp.ne.s32.totalorder %s42, %s43
    %p57 = scmp.eq.s32.totalorder %s21, 1
    %p58 = por %p56, %p57
    %p60 = scmp.ne.s32.totalorder %s43, %s59
    %p61 = scmp.eq.s32.totalorder %s21, 0
    %p62 = por %p60, %p61
    %s64 = sadd.s32 %s63, 1
    %p67 = scmp.eq.s32.totalorder %s15, 1
    %p68 = scmp.ne.s32.totalorder %s63, %s65
    %p69 = scmp.eq.s32.totalorder %s15, 0
    %p70 = por %p68, %p69
    %p71 = scmp.ne.s32.totalorder %s63, %s65
    %p72 = scmp.eq.s32.totalorder %s20, 1
    %p73 = por %p71, %p72
    %p74 = scmp.ne.s32.totalorder %s65, %s66
    %p75 = scmp.eq.s32.totalorder %s20, 0
    %p76 = por %p74, %p75
    %p77 = scmp.ne.s32.totalorder %s65, %s66
    %p78 = scmp.eq.s32.totalorder %s21, 1
    %p79 = por %p77, %p78
    %p81 = scmp.ne.s32.totalorder %s66, %s80
    %p82 = scmp.eq.s32.totalorder %s21, 0
    %p83 = por %p81, %p82
    %s85 = sadd.s32 %s84, 1
    %p88 = scmp.eq.s32.totalorder %s15, 1
    %p89 = scmp.ne.s32.totalorder %s84, %s86
    %p90 = scmp.eq.s32.totalorder %s15, 0
    %p91 = por %p89, %p90
    %p92 = scmp.ne.s32.totalorder %s84, %s86
    %p93 = scmp.eq.s32.totalorder %s20, 1
    %p94 = por %p92, %p93
    %p95 = scmp.ne.s32.totalorder %s86, %s87
    %p96 = scmp.eq.s32.totalorder %s20, 0
    %p97 = por %p95, %p96
    %p98 = scmp.ne.s32.totalorder %s86, %s87
    %p99 = scmp.eq.s32.totalorder %s21, 1
    %p100 = por %p98, %p99
    %p102 = scmp.ne.s32.totalorder %s87, %s101
    %p103 = scmp.eq.s32.totalorder %s21, 0
    %p104 = por %p102, %p103
    %s106 = sadd.s32 %s105, 1
    %p109 = scmp.eq.s32.totalorder %s15, 1
    %p110 = scmp.ne.s32.totalorder %s105, %s107
    %p111 = scmp.eq.s32.totalorder %s15, 0
    %p112 = por %p110, %p111
    %p113 = scmp.ne.s32.totalorder %s105, %s107
    %p114 = scmp.eq.s32.totalorder %s20, 1
    %p115 = por %p113, %p114
    %p116 = scmp.ne.s32.totalorder %s107, %s108
    %p117 = scmp.eq.s32.totalorder %s20, 0
    %p118 = por %p116, %p117
    %p119 = scmp.ne.s32.totalorder %s107, %s108
    %p120 = scmp.eq.s32.totalorder %s21, 1
    %p121 = por %p119, %p120
    %p123 = scmp.ne.s32.totalorder %s108, %s122
    %p124 = scmp.eq.s32.totalorder %s21, 0
    %p125 = por %p123, %p124
    %s127 = sadd.s32 %s126, 1
    %p130 = scmp.eq.s32.totalorder %s15, 1
    %p131 = scmp.ne.s32.totalorder %s126, %s128
    %p132 = scmp.eq.s32.totalorder %s15, 0
    %p133 = por %p131, %p132
    %p134 = scmp.ne.s32.totalorder %s126, %s128
    %p135 = scmp.eq.s32.totalorder %s20, 1
    %p136 = por %p134, %p135
    %p137 = scmp.ne.s32.totalorder %s128, %s129
    %p138 = scmp.eq.s32.totalorder %s20, 0
    %p139 = por %p137, %p138
    %p140 = scmp.ne.s32.totalorder %s128, %s129
    %p141 = scmp.eq.s32.totalorder %s21, 1
    %p142 = por %p140, %p141
    %p144 = scmp.ne.s32.totalorder %s129, %s143
    %p145 = scmp.eq.s32.totalorder %s21, 0
    %p146 = por %p144, %p145
    %s148 = sadd.s32 %s147, 1
    %p151 = scmp.eq.s32.totalorder %s15, 1
    %p152 = scmp.ne.s32.totalorder %s147, %s149
    %p153 = scmp.eq.s32.totalorder %s15, 0
    %p154 = por %p152, %p153
    %p155 = scmp.ne.s32.totalorder %s147, %s149
    %p156 = scmp.eq.s32.totalorder %s20, 1
    %p157 = por %p155, %p156
    %p158 = scmp.ne.s32.totalorder %s149, %s150
    %p159 = scmp.eq.s32.totalorder %s20, 0
    %p160 = por %p158, %p159
    %p161 = scmp.ne.s32.totalorder %s149, %s150
    %p162 = scmp.eq.s32.totalorder %s21, 1
    %p163 = por %p161, %p162
    %p165 = scmp.ne.s32.totalorder %s150, %s164
    %p166 = scmp.eq.s32.totalorder %s21, 0
    %p167 = por %p165, %p166
    %s169 = sadd.s32 %s168, 1
    %p172 = scmp.eq.s32.totalorder %s15, 1
    %p173 = scmp.ne.s32.totalorder %s168, %s170
    %p174 = scmp.eq.s32.totalorder %s15, 0
    %p175 = por %p173, %p174
    %p176 = scmp.ne.s32.totalorder %s168, %s170
    %p177 = scmp.eq.s32.totalorder %s20, 1
    %p178 = por %p176, %p177
    %p179 = scmp.ne.s32.totalorder %s170, %s171
    %p180 = scmp.eq.s32.totalorder %s20, 0
    %p181 = por %p179, %p180
    %p182 = scmp.ne.s32.totalorder %s170, %s171
    %p183 = scmp.eq.s32.totalorder %s21, 1
    %p184 = por %p182, %p183
    %p186 = scmp.ne.s32.totalorder %s171, %s185
    %p187 = scmp.eq.s32.totalorder %s21, 0
    %p188 = por %p186, %p187
    %s190 = sadd.s32 %s189, 1
    %p193 = scmp.eq.s32.totalorder %s15, 1
    %p194 = scmp.ne.s32.totalorder %s189, %s191
    %p195 = scmp.eq.s32.totalorder %s15, 0
    %p196 = por %p194, %p195
    %p197 = scmp.ne.s32.totalorder %s189, %s191
    %p198 = scmp.eq.s32.totalorder %s20, 1
    %p199 = por %p197, %p198
    %p200 = scmp.ne.s32.totalorder %s191, %s192
    %p201 = scmp.eq.s32.totalorder %s20, 0
    %p202 = por %p200, %p201
    %p203 = scmp.ne.s32.totalorder %s191, %s192
    %p204 = scmp.eq.s32.totalorder %s21, 1
    %p205 = por %p203, %p204
    %p207 = scmp.ne.s32.totalorder %s192, %s206
    %p208 = scmp.eq.s32.totalorder %s21, 0
    %p209 = por %p207, %p208
    %s211 = sadd.s32 %s210, 1
    %p214 = scmp.eq.s32.totalorder %s15, 1
    %p215 = scmp.ne.s32.totalorder %s210, %s212
    %p216 = scmp.eq.s32.totalorder %s15, 0
    %p217 = por %p215, %p216
    %p218 = scmp.ne.s32.totalorder %s210, %s212
    %p219 = scmp.eq.s32.totalorder %s20, 1
    %p220 = por %p218, %p219
    %p221 = scmp.ne.s32.totalorder %s212, %s213
    %p222 = scmp.eq.s32.totalorder %s20, 0
    %p223 = por %p221, %p222
    %p224 = scmp.ne.s32.totalorder %s212, %s213
    %p225 = scmp.eq.s32.totalorder %s21, 1
    %p226 = por %p224, %p225
    %p228 = scmp.ne.s32.totalorder %s213, %s227
    %p229 = scmp.eq.s32.totalorder %s21, 0
    %p230 = por %p228, %p229
    %s231 = ssub.s32 %s22, %s34
    %s232 = ssub.s32 %s23, %s30
    %s233 = sor.u32 %s231, %s232
    %p234 = scmp.eq.s32.totalorder %s233, 0
    %s236 = sadd.s32 %s235, 1
    %s237 = scalar_select %p234, %s235, %s236
    %p240 = pneg %p234
    %p241 = scmp.eq.s32.totalorder %s15, 1
    %p242 = por %p240, %p241
    %p243 = scmp.ne.s32.totalorder %s235, %s238
    %p244 = scmp.eq.s32.totalorder %s15, 0
    %p245 = por %p243, %p244
    %p246 = scmp.ne.s32.totalorder %s235, %s238
    %p247 = scmp.eq.s32.totalorder %s20, 1
    %p248 = por %p246, %p247
    %p249 = scmp.ne.s32.totalorder %s238, %s239
    %p250 = scmp.eq.s32.totalorder %s20, 0
    %p251 = por %p249, %p250
    %p252 = scmp.ne.s32.totalorder %s238, %s239
    %p253 = scmp.eq.s32.totalorder %s21, 1
    %p254 = por %p252, %p253
    %p256 = scmp.ne.s32.totalorder %s239, %s255
    %p257 = scmp.eq.s32.totalorder %s21, 0
    %p258 = por %p256, %p257
    %p259 = scmp.le.s32.totalorder 1, %s15
    %p260 = scmp.lt.s32.totalorder %s15, 3
    %p261 = pnand %p259, %p260
    %p262 = pneg %p261
    // Predicated region
    $region9: #{tpu_custom_call.1} parent=5 // pred_check
      _
    $region10: #{tpu_custom_call.1} parent=5 // pred_check_branch
      %264 = sbr.rel (%p261) target = $region12
    $region11: #{tpu_custom_call.1} parent=5 // pred_region
      %s265 = ssub.s32 %s15, 1
      // Predicated region
      $region13: #{tpu_custom_call.1} parent=11 // pred_check
        %p266 = pneg %p76
      $region14: #{tpu_custom_call.1} parent=11 // pred_check_branch
        %268 = sbr.rel (%p266) target = $region16
      $region15: #{tpu_custom_call.1} parent=11 // pred_region
        _
      $region16: #{tpu_custom_call.1} parent=11 // pred_fallthru
        _
      // Predicated region
      $region17: #{tpu_custom_call.1} parent=11 // pred_check
        %p269 = pneg %p97
      $region18: #{tpu_custom_call.1} parent=11 // pred_check_branch
        %271 = sbr.rel (%p269) target = $region20
      $region19: #{tpu_custom_call.1} parent=11 // pred_region
        _
      $region20: #{tpu_custom_call.1} parent=11 // pred_fallthru
        _
      // Predicated region
      $region21: #{tpu_custom_call.1} parent=11 // pred_check
        %p272 = pneg %p118
      $region22: #{tpu_custom_call.1} parent=11 // pred_check_branch
        %274 = sbr.rel (%p272) target = $region24
      $region23: #{tpu_custom_call.1} parent=11 // pred_region
        _
      $region24: #{tpu_custom_call.1} parent=11 // pred_fallthru
        _
      // Predicated region
      $region25: #{tpu_custom_call.1} parent=11 // pred_check
        %p275 = pneg %p139
      $region26: #{tpu_custom_call.1} parent=11 // pred_check_branch
        %277 = sbr.rel (%p275) target = $region28
      $region27: #{tpu_custom_call.1} parent=11 // pred_region
        _
      $region28: #{tpu_custom_call.1} parent=11 // pred_fallthru
        _
      // Predicated region
      $region29: #{tpu_custom_call.1} parent=11 // pred_check
        %p278 = pneg %p160
      $region30: #{tpu_custom_call.1} parent=11 // pred_check_branch
        %280 = sbr.rel (%p278) target = $region32
      $region31: #{tpu_custom_call.1} parent=11 // pred_region
        _
      $region32: #{tpu_custom_call.1} parent=11 // pred_fallthru
        _
      // Predicated region
      $region33: #{tpu_custom_call.1} parent=11 // pred_check
        %p281 = pneg %p181
      $region34: #{tpu_custom_call.1} parent=11 // pred_check_branch
        %283 = sbr.rel (%p281) target = $region36
      $region35: #{tpu_custom_call.1} parent=11 // pred_region
        _
      $region36: #{tpu_custom_call.1} parent=11 // pred_fallthru
        _
      // Predicated region
      $region37: #{tpu_custom_call.1} parent=11 // pred_check
        %p284 = pneg %p202
      $region38: #{tpu_custom_call.1} parent=11 // pred_check_branch
        %286 = sbr.rel (%p284) target = $region40
      $region39: #{tpu_custom_call.1} parent=11 // pred_region
        _
      $region40: #{tpu_custom_call.1} parent=11 // pred_fallthru
        _
      // Predicated region
      $region41: #{tpu_custom_call.1} parent=11 // pred_check
        %p287 = pneg %p223
      $region42: #{tpu_custom_call.1} parent=11 // pred_check_branch
        %289 = sbr.rel (%p287) target = $region44
      $region43: #{tpu_custom_call.1} parent=11 // pred_region
        _
      $region44: #{tpu_custom_call.1} parent=11 // pred_fallthru
        _
    $region12: #{tpu_custom_call.1} parent=5 // pred_fallthru
      _
    %p290 = scmp.lt.s32.totalorder %s15, 2
    // Predicated region
    $region45: #{tpu_custom_call.1} parent=5 // pred_check
      %p291 = pneg %p290
    $region46: #{tpu_custom_call.1} parent=5 // pred_check_branch
      %293 = sbr.rel (%p291) target = $region48
    $region47: #{tpu_custom_call.1} parent=5 // pred_region
      // Predicated region
      $region49: #{tpu_custom_call.1} parent=47 // pred_check
        %p294 = pneg %p49
      $region50: #{tpu_custom_call.1} parent=47 // pred_check_branch
        %296 = sbr.rel (%p294) target = $region52
      $region51: #{tpu_custom_call.1} parent=47 // pred_region
        %s297 = smul.u32 2, %s23
        %p298 = scmp.lt.s32.totalorder %s22, 1
        %s299 = scalar_select %p298, %s22, 1
        %p300 = scmp.lt.s32.totalorder %s297, 1
        %s301 = scalar_select %p300, %s297, 1
        %s302 = smul.addr %s299, 2
        %s303 = sadd.s32 %s301, %s302
        %s304 = smul.addr %s303, 2
        %s305 = scalar_lea.vmem %s0, %s304
        %s306 = smul.u32 2, %s23
      $region52: #{tpu_custom_call.1} parent=47 // pred_fallthru
        _
    $region48: #{tpu_custom_call.1} parent=5 // pred_fallthru
      _
    %p307 = scmp.le.s32.totalorder 1, %s15
    %p308 = scmp.lt.s32.totalorder %s15, 3
    %p309 = pnand %p307, %p308
    %p310 = pneg %p309
    // Predicated region
    $region53: #{tpu_custom_call.1} parent=5 // pred_check
      _
    $region54: #{tpu_custom_call.1} parent=5 // pred_check_branch
      %312 = sbr.rel (%p309) target = $region56
    $region55: #{tpu_custom_call.1} parent=5 // pred_region
      %s313 = ssub.s32 %s15, 1
      %s314 = smul.u32 2, %s25
      %p315 = scmp.lt.s32.totalorder %s24, 1
      %s316 = scalar_select %p315, %s24, 1
      %p317 = scmp.lt.s32.totalorder %s314, 1
      %s318 = scalar_select %p317, %s314, 1
      %s319 = smul.addr %s316, 2
      %s320 = sadd.s32 %s318, %s319
      %s321 = smul.addr %s320, 2
      %s322 = scalar_lea.vmem %s0, %s321
      %p323 = pneg %p55
      %p324 = pneg %p52
      %p325 = pneg %p76
      %p326 = pneg %p73
      %p327 = pneg %p97
      %p328 = pneg %p94
      %p329 = pneg %p118
      %p330 = pneg %p115
      %p331 = pneg %p139
      %p332 = pneg %p136
      %p333 = pneg %p160
      %p334 = pneg %p157
      %p335 = pneg %p181
      %p336 = pneg %p178
      %p337 = pneg %p202
      %p338 = pneg %p199
      %p339 = pneg %p223
      %p340 = pneg %p220
      %p341 = pneg %p251
      %p342 = pneg %p248
      %s343 = smul.u32 2, %s25
      %p344 = scmp.lt.s32.totalorder %s24, 1
      %s345 = scalar_select %p344, %s24, 1
      %p346 = scmp.lt.s32.totalorder %s343, 1
      %s347 = scalar_select %p346, %s343, 1
      %s348 = smul.addr %s345, 2
      %s349 = sadd.s32 %s347, %s348
      %s350 = smul.addr %s349, 4
      %s351 = scalar_lea.vmem %s9, %s350
      %s352 = smul.u32 2, %s25
      %p353 = scmp.lt.s32.totalorder %s24, 1
      %s354 = scalar_select %p353, %s24, 1
      %p355 = scmp.lt.s32.totalorder %s352, 1
      %s356 = scalar_select %p355, %s352, 1
      %s357 = smul.addr %s354, 2
      %s358 = sadd.s32 %s356, %s357
      %s359 = smul.addr %s358, 2
      %s360 = scalar_lea.vmem %s0, %s359
      %s361 = smul.u32 2, %s25
      %s362 = smul.u32 2, %s25
      %p363 = scmp.lt.s32.totalorder %s24, 1
      %s364 = scalar_select %p363, %s24, 1
      %p365 = scmp.lt.s32.totalorder %s362, 1
      %s366 = scalar_select %p365, %s362, 1
      %s367 = smul.addr %s364, 2
      %s368 = sadd.s32 %s366, %s367
      %s369 = smul.addr %s368, 4
      %s370 = scalar_lea.vmem %s9, %s369
      %s371 = smul.u32 2, %s25
      %v373 = vld [vmem:[%s360] sm:$0xf]
      %v374 = vld [vmem:[%s1] sm:$0xff]
      %v375 = vld [vmem:[%s1 + $0x8] sm:$0xff]
      %v376 = vld [vmem:[%s1 + $0x10] sm:$0xff]
      %v377 = vld [vmem:[%s1 + $0x18] sm:$0x3f]
      %v378 = vld [vmem:[%s2] sm:$0xff]
      %v379 = vld [vmem:[%s2 + $0x8] sm:$0xff]
      %v380 = vld [vmem:[%s2 + $0x10] sm:$0xff]
      %v381 = vld [vmem:[%s2 + $0x18] sm:$0x3f]
      %383 = vset.pattern.permute.xlu0 0
      %384 = vperm.xlu0 %383, %v374
      %v385 = vpop.permute.xlu0 %384
      %388 = vset.pattern.permute.xlu0 0
      %389 = vperm.xlu0 %388, %v375
      %v390 = vpop.permute.xlu0 %389
      %393 = vset.pattern.permute.xlu0 0
      %394 = vperm.xlu0 %393, %v376
      %v395 = vpop.permute.xlu0 %394
      %398 = vset.pattern.permute.xlu0 0
      %399 = vperm.xlu0 %398, %v377
      %v400 = vpop.permute.xlu0 %399
      %v403 = vperm.slane %v373, 0
      %v404 = vperm.slane %v373, 2
      %v407 = vperm.slane %v403, 0
      %v408 = vperm.slane %v404, 0
      %v409 = vmul.f32 %v385, %v407
      %v410 = vmul.f32 %v385, %v408
      %v411 = vmul.f32 %v390, %v407
      %v412 = vmul.f32 %v390, %v408
      %v413 = vmul.f32 %v395, %v407
      %v414 = vmul.f32 %v395, %v408
      %v415 = vmul.f32 %v400, %v407
      %v416 = vmul.f32 %v400, %v408
      %418 = vset.pattern.permute.xlu0 0
      %419 = vperm.xlu0 %418, %v378
      %v420 = vpop.permute.xlu0 %419
      %423 = vset.pattern.permute.xlu0 0
      %424 = vperm.xlu0 %423, %v379
      %v425 = vpop.permute.xlu0 %424
      %428 = vset.pattern.permute.xlu0 0
      %429 = vperm.xlu0 %428, %v380
      %v430 = vpop.permute.xlu0 %429
      %433 = vset.pattern.permute.xlu0 0
      %434 = vperm.xlu0 %433, %v381
      %v435 = vpop.permute.xlu0 %434
      %v437 = vadd.f32 %v420, %v409
      %v438 = vadd.f32 %v420, %v410
      %v439 = vadd.f32 %v425, %v411
      %v440 = vadd.f32 %v425, %v412
      %v441 = vadd.f32 %v430, %v413
      %v442 = vadd.f32 %v430, %v414
      %v443 = vadd.f32 %v435, %v415
      %v444 = vadd.f32 %v435, %v416
      %445 = vset.pattern.permute.xlu0 1
      %446 = vperm.xlu0 %445, %v374
      %v447 = vpop.permute.xlu0 %446
      %449 = vset.pattern.permute.xlu0 1
      %450 = vperm.xlu0 %449, %v375
      %v451 = vpop.permute.xlu0 %450
      %453 = vset.pattern.permute.xlu0 1
      %454 = vperm.xlu0 %453, %v376
      %v455 = vpop.permute.xlu0 %454
      %457 = vset.pattern.permute.xlu0 1
      %458 = vperm.xlu0 %457, %v377
      %v459 = vpop.permute.xlu0 %458
      %v461 = vperm.slane %v373, 1
      %v462 = vperm.slane %v373, 3
      %v465 = vperm.slane %v461, 1
      %v466 = vperm.slane %v462, 1
      %v467 = vmul.f32 %v447, %v465
      %v468 = vmul.f32 %v447, %v466
      %v469 = vmul.f32 %v451, %v465
      %v470 = vmul.f32 %v451, %v466
      %v471 = vmul.f32 %v455, %v465
      %v472 = vmul.f32 %v455, %v466
      %v473 = vmul.f32 %v459, %v465
      %v474 = vmul.f32 %v459, %v466
      %v475 = vadd.f32 %v437, %v467
      %v476 = vadd.f32 %v438, %v468
      %v477 = vadd.f32 %v439, %v469
      %v478 = vadd.f32 %v440, %v470
      %v479 = vadd.f32 %v441, %v471
      %v480 = vadd.f32 %v442, %v472
      %v481 = vadd.f32 %v443, %v473
      %v482 = vadd.f32 %v444, %v474
      %v483 = vand.u32 2147483647, %v475
      %vm484 = vcmp.le.f32.partialorder %v483, 0.7853982
      %vm485 = vcmp.lt.s32.totalorder %v475, 0
      %v486 = vand.u32 %v475, 2139095040
      %v487 = vshrl.u32 %v486, 23
      %v488 = vsub.s32 %v487, 127
      %v489 = vand.u32 2147483647, %v475
      %v490 = vand.u32 %v489, 8388607
      %v491 = vor.u32 %v490, 8388608
      %v492 = vsub.s32 0, %v491
      %v493 = vadd.s32 %v488, 1
      %vm494 = vcmp.gt.s32.totalorder %v493, 0
      %v495 = vsel %vm494, %v493, 0
      %v496 = vshrl.u32 %v495, 5
      %v497 = vand.u32 %v495, 31
      %v498 = vsub.s32 32, %v497
      %v499 = vshrl.u32 683565275, %v498
      %v500 = vshll.u32 683565275, %v497
      %v501 = vshrl.u32 2475754826, %v498
      %v502 = vor.u32 %v500, %v501
      %v503 = vshll.u32 2475754826, %v497
      %v504 = vshrl.u32 2131351028, %v498
      %v505 = vor.u32 %v503, %v504
      %v506 = vshll.u32 2131351028, %v497
      %v507 = vshrl.u32 2102212464, %v498
      %v508 = vor.u32 %v506, %v507
      %v509 = vshll.u32 2102212464, %v497
      %v510 = vshrl.u32 920167782, %v498
      %v511 = vor.u32 %v509, %v510
      %v512 = vshll.u32 920167782, %v497
      %v513 = vshrl.u32 1326507024, %v498
      %v514 = vor.u32 %v512, %v513
      %vm515 = vcmp.lt.s32.totalorder %v496, 1
      %vm516 = vcmp.lt.s32.totalorder %v496, 2
      %vm517 = vcmp.lt.s32.totalorder %v496, 3
      %vm518 = vcmp.lt.s32.totalorder %v496, 4
      %v519 = vsel %vm515, %v499, %v502
      %v520 = vsel %vm518, %v508, 2102212464
      %v521 = vsel %vm517, %v505, %v520
      %v522 = vsel %vm516, %v519, %v521
      %v523 = vsel %vm515, %v502, %v505
      %v524 = vsel %vm518, %v511, 920167782
      %v525 = vsel %vm517, %v508, %v524
      %v526 = vsel %vm516, %v523, %v525
      %v527 = vsel %vm515, %v505, %v508
      %v528 = vsel %vm518, %v514, 1326507024
      %v529 = vsel %vm517, %v511, %v528
      %v530 = vsel %vm516, %v527, %v529
      %v531 = vshll.u32 %v491, 8
      %v532 = vand.u32 %v531, 65535
      %v533 = vshrl.u32 %v531, 16
      %v534 = vand.u32 %v530, 65535
      %v535 = vshrl.u32 %v530, 16
      %v536 = vmul.u32 %v532, %v534
      %v537 = vmul.u32 %v532, %v535
      %v538 = vmul.u32 %v533, %v534
      %v539 = vmul.u32 %v533, %v535
      %v540 = vshll.u32 %v537, 16
      %v541 = vshrl.u32 %v537, 16
      %v542 = vshll.u32 %v538, 16
      %v543 = vshrl.u32 %v538, 16
      %vm544 = vc.u32 %v536, %v540
      %v545 = vsel %vm544, 1, 0
      %v546 = vadd.s32 %v536, %v540
      %v547 = vadd.s32 %v539, %v545
      %vm548 = vc.u32 %v546, %v542
      %v549 = vsel %vm548, 1, 0
      %v550 = vadd.s32 %v546, %v542
      %v551 = vadd.s32 %v547, %v549
      %v552 = vadd.s32 %v551, %v541
      %v553 = vadd.s32 %v552, %v543
      %v554 = vand.u32 %v531, 65535
      %v555 = vshrl.u32 %v531, 16
      %v556 = vand.u32 %v526, 65535
      %v557 = vshrl.u32 %v526, 16
      %v558 = vmul.u32 %v554, %v556
      %v559 = vmul.u32 %v554, %v557
      %v560 = vmul.u32 %v555, %v556
      %v561 = vmul.u32 %v555, %v557
      %v562 = vshll.u32 %v559, 16
      %v563 = vshrl.u32 %v559, 16
      %v564 = vshll.u32 %v560, 16
      %v565 = vshrl.u32 %v560, 16
      %vm566 = vc.u32 %v558, %v562
      %v567 = vsel %vm566, 1, 0
      %v568 = vadd.s32 %v558, %v562
      %v569 = vadd.s32 %v561, %v567
      %vm570 = vc.u32 %v568, %v564
      %v571 = vsel %vm570, 1, 0
      %v572 = vadd.s32 %v568, %v564
      %v573 = vadd.s32 %v569, %v571
      %v574 = vadd.s32 %v573, %v563
      %v575 = vadd.s32 %v574, %v565
      %v576 = vmul.u32 %v531, %v522
      %v577 = vadd.s32 %v553, %v572
      %vm578 = vc.u32 %v553, %v572
      %v579 = vadd.s32 %v575, 1
      %v580 = vsel %vm578, %v579, %v575
      %v581 = vadd.s32 %v576, %v580
      %v582 = vadd.s32 %v581, 536870912
      %v583 = vshrl.u32 %v582, 30
      %v584 = vshll.u32 %v583, 30
      %v585 = vsub.s32 %v581, %v584
      %vm586 = vcmp.lt.s32.totalorder %v585, 0
      %v587 = vsub.s32 0, %v585
      %v588 = vsel %vm586, %v587, %v585
      %v589 = vclz %v588
      %v590 = vsub.s32 %v589, 2
      %vm591 = vcmp.gt.s32.totalorder 0, %v590
      %v592 = vsel %vm591, 0, %v590
      %v593 = vsub.s32 32, %v592
      %v594 = vshll.u32 %v585, %v592
      %v595 = vshrl.u32 %v577, %v593
      %v596 = vor.u32 %v594, %v595
      %v597 = vsub.s32 4294967266, %v592
      %v598 = vadd.s32 %v597, 127
      %v599 = vshll.u32 %v598, 23
      %v600 = vor.u32 4788187, %v599
      %v601 = vand.u32 2147483647, %v600
      %v603 = vcvt.s32.f32 %v596
      %v604 = vmul.f32 %v603, %v601
      %v605 = vxor.u32 %v604, 2147483648
      %v606 = vsel %vm485, %v605, %v604
      %v607 = vsub.s32 4, %v583
      %v608 = vsel %vm485, %v607, %v583
      %v609 = vsel %vm484, %v475, %v606
      %v610 = vsel %vm484, 0, %v608
      %v611 = vmul.f32 %v609, %v609
      %v612 = vmul.f32 %v611, -0.001358992
      %v613 = vadd.f32 %v612, 0.041655596
      %v614 = vmul.f32 %v611, %v613
      %v615 = vadd.f32 %v614, -0.4999988
      %v616 = vmul.f32 %v611, %v615
      %v617 = vadd.f32 1.0, %v616
      %v618 = vmul.f32 %v609, %v609
      %v619 = vmul.f32 %v618, -0.00019511016
      %v620 = vadd.f32 %v619, 0.008332121
      %v621 = vmul.f32 %v618, %v620
      %v622 = vadd.f32 %v621, -0.16666654
      %v623 = vmul.f32 %v618, %v622
      %v624 = vadd.f32 %v623, 1.0
      %v625 = vmul.f32 %v624, %v609
      %vm626 = vweird.f32 %v475
      %v627 = vadd.s32 %v610, 3
      %v628 = vand.u32 %v627, 3
      %vm629 = vcmp.lt.s32.totalorder %v628, 2
      %vm630 = vcmp.eq.s32.totalorder %v628, 0
      %v631 = vxor.u32 %v625, 2147483648
      %v632 = vsel %vm630, %v617, %v631
      %vm633 = vcmp.eq.s32.totalorder %v628, 2
      %v634 = vxor.u32 %v617, 2147483648
      %v635 = vsel %vm633, %v634, %v625
      %v636 = vsel %vm629, %v632, %v635
      %v637 = vsel %vm626, nan, %v636
      %v638 = vand.u32 2147483647, %v476
      %vm639 = vcmp.le.f32.partialorder %v638, 0.7853982
      %vm640 = vcmp.lt.s32.totalorder %v476, 0
      %v641 = vand.u32 %v476, 2139095040
      %v642 = vshrl.u32 %v641, 23
      %v643 = vsub.s32 %v642, 127
      %v644 = vand.u32 2147483647, %v476
      %v645 = vand.u32 %v644, 8388607
      %v646 = vor.u32 %v645, 8388608
      %v647 = vsub.s32 0, %v646
      %v648 = vadd.s32 %v643, 1
      %vm649 = vcmp.gt.s32.totalorder %v648, 0
      %v650 = vsel %vm649, %v648, 0
      %v651 = vshrl.u32 %v650, 5
      %v652 = vand.u32 %v650, 31
      %v653 = vsub.s32 32, %v652
      %v654 = vshrl.u32 683565275, %v653
      %v655 = vshll.u32 683565275, %v652
      %v656 = vshrl.u32 2475754826, %v653
      %v657 = vor.u32 %v655, %v656
      %v658 = vshll.u32 2475754826, %v652
      %v659 = vshrl.u32 2131351028, %v653
      %v660 = vor.u32 %v658, %v659
      %v661 = vshll.u32 2131351028, %v652
      %v662 = vshrl.u32 2102212464, %v653
      %v663 = vor.u32 %v661, %v662
      %v664 = vshll.u32 2102212464, %v652
      %v665 = vshrl.u32 920167782, %v653
      %v666 = vor.u32 %v664, %v665
      %v667 = vshll.u32 920167782, %v652
      %v668 = vshrl.u32 1326507024, %v653
      %v669 = vor.u32 %v667, %v668
      %vm670 = vcmp.lt.s32.totalorder %v651, 1
      %vm671 = vcmp.lt.s32.totalorder %v651, 2
      %vm672 = vcmp.lt.s32.totalorder %v651, 3
      %vm673 = vcmp.lt.s32.totalorder %v651, 4
      %v674 = vsel %vm670, %v654, %v657
      %v675 = vsel %vm673, %v663, 2102212464
      %v676 = vsel %vm672, %v660, %v675
      %v677 = vsel %vm671, %v674, %v676
      %v678 = vsel %vm670, %v657, %v660
      %v679 = vsel %vm673, %v666, 920167782
      %v680 = vsel %vm672, %v663, %v679
      %v681 = vsel %vm671, %v678, %v680
      %v682 = vsel %vm670, %v660, %v663
      %v683 = vsel %vm673, %v669, 1326507024
      %v684 = vsel %vm672, %v666, %v683
      %v685 = vsel %vm671, %v682, %v684
      %v686 = vshll.u32 %v646, 8
      %v687 = vand.u32 %v686, 65535
      %v688 = vshrl.u32 %v686, 16
      %v689 = vand.u32 %v685, 65535
      %v690 = vshrl.u32 %v685, 16
      %v691 = vmul.u32 %v687, %v689
      %v692 = vmul.u32 %v687, %v690
      %v693 = vmul.u32 %v688, %v689
      %v694 = vmul.u32 %v688, %v690
      %v695 = vshll.u32 %v692, 16
      %v696 = vshrl.u32 %v692, 16
      %v697 = vshll.u32 %v693, 16
      %v698 = vshrl.u32 %v693, 16
      %vm699 = vc.u32 %v691, %v695
      %v700 = vsel %vm699, 1, 0
      %v701 = vadd.s32 %v691, %v695
      %v702 = vadd.s32 %v694, %v700
      %vm703 = vc.u32 %v701, %v697
      %v704 = vsel %vm703, 1, 0
      %v705 = vadd.s32 %v701, %v697
      %v706 = vadd.s32 %v702, %v704
      %v707 = vadd.s32 %v706, %v696
      %v708 = vadd.s32 %v707, %v698
      %v709 = vand.u32 %v686, 65535
      %v710 = vshrl.u32 %v686, 16
      %v711 = vand.u32 %v681, 65535
      %v712 = vshrl.u32 %v681, 16
      %v713 = vmul.u32 %v709, %v711
      %v714 = vmul.u32 %v709, %v712
      %v715 = vmul.u32 %v710, %v711
      %v716 = vmul.u32 %v710, %v712
      %v717 = vshll.u32 %v714, 16
      %v718 = vshrl.u32 %v714, 16
      %v719 = vshll.u32 %v715, 16
      %v720 = vshrl.u32 %v715, 16
      %vm721 = vc.u32 %v713, %v717
      %v722 = vsel %vm721, 1, 0
      %v723 = vadd.s32 %v713, %v717
      %v724 = vadd.s32 %v716, %v722
      %vm725 = vc.u32 %v723, %v719
      %v726 = vsel %vm725, 1, 0
      %v727 = vadd.s32 %v723, %v719
      %v728 = vadd.s32 %v724, %v726
      %v729 = vadd.s32 %v728, %v718
      %v730 = vadd.s32 %v729, %v720
      %v731 = vmul.u32 %v686, %v677
      %v732 = vadd.s32 %v708, %v727
      %vm733 = vc.u32 %v708, %v727
      %v734 = vadd.s32 %v730, 1
      %v735 = vsel %vm733, %v734, %v730
      %v736 = vadd.s32 %v731, %v735
      %v737 = vadd.s32 %v736, 536870912
      %v738 = vshrl.u32 %v737, 30
      %v739 = vshll.u32 %v738, 30
      %v740 = vsub.s32 %v736, %v739
      %vm741 = vcmp.lt.s32.totalorder %v740, 0
      %v742 = vsub.s32 0, %v740
      %v743 = vsel %vm741, %v742, %v740
      %v744 = vclz %v743
      %v745 = vsub.s32 %v744, 2
      %vm746 = vcmp.gt.s32.totalorder 0, %v745
      %v747 = vsel %vm746, 0, %v745
      %v748 = vsub.s32 32, %v747
      %v749 = vshll.u32 %v740, %v747
      %v750 = vshrl.u32 %v732, %v748
      %v751 = vor.u32 %v749, %v750
      %v752 = vsub.s32 4294967266, %v747
      %v753 = vadd.s32 %v752, 127
      %v754 = vshll.u32 %v753, 23
      %v755 = vor.u32 4788187, %v754
      %v756 = vand.u32 2147483647, %v755
      %v758 = vcvt.s32.f32 %v751
      %v759 = vmul.f32 %v758, %v756
      %v760 = vxor.u32 %v759, 2147483648
      %v761 = vsel %vm640, %v760, %v759
      %v762 = vsub.s32 4, %v738
      %v763 = vsel %vm640, %v762, %v738
      %v764 = vsel %vm639, %v476, %v761
      %v765 = vsel %vm639, 0, %v763
      %v766 = vmul.f32 %v764, %v764
      %v767 = vmul.f32 %v766, -0.001358992
      %v768 = vadd.f32 %v767, 0.041655596
      %v769 = vmul.f32 %v766, %v768
      %v770 = vadd.f32 %v769, -0.4999988
      %v771 = vmul.f32 %v766, %v770
      %v772 = vadd.f32 1.0, %v771
      %v773 = vmul.f32 %v764, %v764
      %v774 = vmul.f32 %v773, -0.00019511016
      %v775 = vadd.f32 %v774, 0.008332121
      %v776 = vmul.f32 %v773, %v775
      %v777 = vadd.f32 %v776, -0.16666654
      %v778 = vmul.f32 %v773, %v777
      %v779 = vadd.f32 %v778, 1.0
      %v780 = vmul.f32 %v779, %v764
      %vm781 = vweird.f32 %v476
      %v782 = vadd.s32 %v765, 3
      %v783 = vand.u32 %v782, 3
      %vm784 = vcmp.lt.s32.totalorder %v783, 2
      %vm785 = vcmp.eq.s32.totalorder %v783, 0
      %v786 = vxor.u32 %v780, 2147483648
      %v787 = vsel %vm785, %v772, %v786
      %vm788 = vcmp.eq.s32.totalorder %v783, 2
      %v789 = vxor.u32 %v772, 2147483648
      %v790 = vsel %vm788, %v789, %v780
      %v791 = vsel %vm784, %v787, %v790
      %v792 = vsel %vm781, nan, %v791
      %v793 = vand.u32 2147483647, %v477
      %vm794 = vcmp.le.f32.partialorder %v793, 0.7853982
      %vm795 = vcmp.lt.s32.totalorder %v477, 0
      %v796 = vand.u32 %v477, 2139095040
      %v797 = vshrl.u32 %v796, 23
      %v798 = vsub.s32 %v797, 127
      %v799 = vand.u32 2147483647, %v477
      %v800 = vand.u32 %v799, 8388607
      %v801 = vor.u32 %v800, 8388608
      %v802 = vsub.s32 0, %v801
      %v803 = vadd.s32 %v798, 1
      %vm804 = vcmp.gt.s32.totalorder %v803, 0
      %v805 = vsel %vm804, %v803, 0
      %v806 = vshrl.u32 %v805, 5
      %v807 = vand.u32 %v805, 31
      %v808 = vsub.s32 32, %v807
      %v809 = vshrl.u32 683565275, %v808
      %v810 = vshll.u32 683565275, %v807
      %v811 = vshrl.u32 2475754826, %v808
      %v812 = vor.u32 %v810, %v811
      %v813 = vshll.u32 2475754826, %v807
      %v814 = vshrl.u32 2131351028, %v808
      %v815 = vor.u32 %v813, %v814
      %v816 = vshll.u32 2131351028, %v807
      %v817 = vshrl.u32 2102212464, %v808
      %v818 = vor.u32 %v816, %v817
      %v819 = vshll.u32 2102212464, %v807
      %v820 = vshrl.u32 920167782, %v808
      %v821 = vor.u32 %v819, %v820
      %v822 = vshll.u32 920167782, %v807
      %v823 = vshrl.u32 1326507024, %v808
      %v824 = vor.u32 %v822, %v823
      %vm825 = vcmp.lt.s32.totalorder %v806, 1
      %vm826 = vcmp.lt.s32.totalorder %v806, 2
      %vm827 = vcmp.lt.s32.totalorder %v806, 3
      %vm828 = vcmp.lt.s32.totalorder %v806, 4
      %v829 = vsel %vm825, %v809, %v812
      %v830 = vsel %vm828, %v818, 2102212464
      %v831 = vsel %vm827, %v815, %v830
      %v832 = vsel %vm826, %v829, %v831
      %v833 = vsel %vm825, %v812, %v815
      %v834 = vsel %vm828, %v821, 920167782
      %v835 = vsel %vm827, %v818, %v834
      %v836 = vsel %vm826, %v833, %v835
      %v837 = vsel %vm825, %v815, %v818
      %v838 = vsel %vm828, %v824, 1326507024
      %v839 = vsel %vm827, %v821, %v838
      %v840 = vsel %vm826, %v837, %v839
      %v841 = vshll.u32 %v801, 8
      %v842 = vand.u32 %v841, 65535
      %v843 = vshrl.u32 %v841, 16
      %v844 = vand.u32 %v840, 65535
      %v845 = vshrl.u32 %v840, 16
      %v846 = vmul.u32 %v842, %v844
      %v847 = vmul.u32 %v842, %v845
      %v848 = vmul.u32 %v843, %v844
      %v849 = vmul.u32 %v843, %v845
      %v850 = vshll.u32 %v847, 16
      %v851 = vshrl.u32 %v847, 16
      %v852 = vshll.u32 %v848, 16
      %v853 = vshrl.u32 %v848, 16
      %vm854 = vc.u32 %v846, %v850
      %v855 = vsel %vm854, 1, 0
      %v856 = vadd.s32 %v846, %v850
      %v857 = vadd.s32 %v849, %v855
      %vm858 = vc.u32 %v856, %v852
      %v859 = vsel %vm858, 1, 0
      %v860 = vadd.s32 %v856, %v852
      %v861 = vadd.s32 %v857, %v859
      %v862 = vadd.s32 %v861, %v851
      %v863 = vadd.s32 %v862, %v853
      %v864 = vand.u32 %v841, 65535
      %v865 = vshrl.u32 %v841, 16
      %v866 = vand.u32 %v836, 65535
      %v867 = vshrl.u32 %v836, 16
      %v868 = vmul.u32 %v864, %v866
      %v869 = vmul.u32 %v864, %v867
      %v870 = vmul.u32 %v865, %v866
      %v871 = vmul.u32 %v865, %v867
      %v872 = vshll.u32 %v869, 16
      %v873 = vshrl.u32 %v869, 16
      %v874 = vshll.u32 %v870, 16
      %v875 = vshrl.u32 %v870, 16
      %vm876 = vc.u32 %v868, %v872
      %v877 = vsel %vm876, 1, 0
      %v878 = vadd.s32 %v868, %v872
      %v879 = vadd.s32 %v871, %v877
      %vm880 = vc.u32 %v878, %v874
      %v881 = vsel %vm880, 1, 0
      %v882 = vadd.s32 %v878, %v874
      %v883 = vadd.s32 %v879, %v881
      %v884 = vadd.s32 %v883, %v873
      %v885 = vadd.s32 %v884, %v875
      %v886 = vmul.u32 %v841, %v832
      %v887 = vadd.s32 %v863, %v882
      %vm888 = vc.u32 %v863, %v882
      %v889 = vadd.s32 %v885, 1
      %v890 = vsel %vm888, %v889, %v885
      %v891 = vadd.s32 %v886, %v890
      %v892 = vadd.s32 %v891, 536870912
      %v893 = vshrl.u32 %v892, 30
      %v894 = vshll.u32 %v893, 30
      %v895 = vsub.s32 %v891, %v894
      %vm896 = vcmp.lt.s32.totalorder %v895, 0
      %v897 = vsub.s32 0, %v895
      %v898 = vsel %vm896, %v897, %v895
      %v899 = vclz %v898
      %v900 = vsub.s32 %v899, 2
      %vm901 = vcmp.gt.s32.totalorder 0, %v900
      %v902 = vsel %vm901, 0, %v900
      %v903 = vsub.s32 32, %v902
      %v904 = vshll.u32 %v895, %v902
      %v905 = vshrl.u32 %v887, %v903
      %v906 = vor.u32 %v904, %v905
      %v907 = vsub.s32 4294967266, %v902
      %v908 = vadd.s32 %v907, 127
      %v909 = vshll.u32 %v908, 23
      %v910 = vor.u32 4788187, %v909
      %v911 = vand.u32 2147483647, %v910
      %v913 = vcvt.s32.f32 %v906
      %v914 = vmul.f32 %v913, %v911
      %v915 = vxor.u32 %v914, 2147483648
      %v916 = vsel %vm795, %v915, %v914
      %v917 = vsub.s32 4, %v893
      %v918 = vsel %vm795, %v917, %v893
      %v919 = vsel %vm794, %v477, %v916
      %v920 = vsel %vm794, 0, %v918
      %v921 = vmul.f32 %v919, %v919
      %v922 = vmul.f32 %v921, -0.001358992
      %v923 = vadd.f32 %v922, 0.041655596
      %v924 = vmul.f32 %v921, %v923
      %v925 = vadd.f32 %v924, -0.4999988
      %v926 = vmul.f32 %v921, %v925
      %v927 = vadd.f32 1.0, %v926
      %v928 = vmul.f32 %v919, %v919
      %v929 = vmul.f32 %v928, -0.00019511016
      %v930 = vadd.f32 %v929, 0.008332121
      %v931 = vmul.f32 %v928, %v930
      %v932 = vadd.f32 %v931, -0.16666654
      %v933 = vmul.f32 %v928, %v932
      %v934 = vadd.f32 %v933, 1.0
      %v935 = vmul.f32 %v934, %v919
      %vm936 = vweird.f32 %v477
      %v937 = vadd.s32 %v920, 3
      %v938 = vand.u32 %v937, 3
      %vm939 = vcmp.lt.s32.totalorder %v938, 2
      %vm940 = vcmp.eq.s32.totalorder %v938, 0
      %v941 = vxor.u32 %v935, 2147483648
      %v942 = vsel %vm940, %v927, %v941
      %vm943 = vcmp.eq.s32.totalorder %v938, 2
      %v944 = vxor.u32 %v927, 2147483648
      %v945 = vsel %vm943, %v944, %v935
      %v946 = vsel %vm939, %v942, %v945
      %v947 = vsel %vm936, nan, %v946
      %v948 = vand.u32 2147483647, %v478
      %vm949 = vcmp.le.f32.partialorder %v948, 0.7853982
      %vm950 = vcmp.lt.s32.totalorder %v478, 0
      %v951 = vand.u32 %v478, 2139095040
      %v952 = vshrl.u32 %v951, 23
      %v953 = vsub.s32 %v952, 127
      %v954 = vand.u32 2147483647, %v478
      %v955 = vand.u32 %v954, 8388607
      %v956 = vor.u32 %v955, 8388608
      %v957 = vsub.s32 0, %v956
      %v958 = vadd.s32 %v953, 1
      %vm959 = vcmp.gt.s32.totalorder %v958, 0
      %v960 = vsel %vm959, %v958, 0
      %v961 = vshrl.u32 %v960, 5
      %v962 = vand.u32 %v960, 31
      %v963 = vsub.s32 32, %v962
      %v964 = vshrl.u32 683565275, %v963
      %v965 = vshll.u32 683565275, %v962
      %v966 = vshrl.u32 2475754826, %v963
      %v967 = vor.u32 %v965, %v966
      %v968 = vshll.u32 2475754826, %v962
      %v969 = vshrl.u32 2131351028, %v963
      %v970 = vor.u32 %v968, %v969
      %v971 = vshll.u32 2131351028, %v962
      %v972 = vshrl.u32 2102212464, %v963
      %v973 = vor.u32 %v971, %v972
      %v974 = vshll.u32 2102212464, %v962
      %v975 = vshrl.u32 920167782, %v963
      %v976 = vor.u32 %v974, %v975
      %v977 = vshll.u32 920167782, %v962
      %v978 = vshrl.u32 1326507024, %v963
      %v979 = vor.u32 %v977, %v978
      %vm980 = vcmp.lt.s32.totalorder %v961, 1
      %vm981 = vcmp.lt.s32.totalorder %v961, 2
      %vm982 = vcmp.lt.s32.totalorder %v961, 3
      %vm983 = vcmp.lt.s32.totalorder %v961, 4
      %v984 = vsel %vm980, %v964, %v967
      %v985 = vsel %vm983, %v973, 2102212464
      %v986 = vsel %vm982, %v970, %v985
      %v987 = vsel %vm981, %v984, %v986
      %v988 = vsel %vm980, %v967, %v970
      %v989 = vsel %vm983, %v976, 920167782
      %v990 = vsel %vm982, %v973, %v989
      %v991 = vsel %vm981, %v988, %v990
      %v992 = vsel %vm980, %v970, %v973
      %v993 = vsel %vm983, %v979, 1326507024
      %v994 = vsel %vm982, %v976, %v993
      %v995 = vsel %vm981, %v992, %v994
      %v996 = vshll.u32 %v956, 8
      %v997 = vand.u32 %v996, 65535
      %v998 = vshrl.u32 %v996, 16
      %v999 = vand.u32 %v995, 65535
      %v1000 = vshrl.u32 %v995, 16
      %v1001 = vmul.u32 %v997, %v999
      %v1002 = vmul.u32 %v997, %v1000
      %v1003 = vmul.u32 %v998, %v999
      %v1004 = vmul.u32 %v998, %v1000
      %v1005 = vshll.u32 %v1002, 16
      %v1006 = vshrl.u32 %v1002, 16
      %v1007 = vshll.u32 %v1003, 16
      %v1008 = vshrl.u32 %v1003, 16
      %vm1009 = vc.u32 %v1001, %v1005
      %v1010 = vsel %vm1009, 1, 0
      %v1011 = vadd.s32 %v1001, %v1005
      %v1012 = vadd.s32 %v1004, %v1010
      %vm1013 = vc.u32 %v1011, %v1007
      %v1014 = vsel %vm1013, 1, 0
      %v1015 = vadd.s32 %v1011, %v1007
      %v1016 = vadd.s32 %v1012, %v1014
      %v1017 = vadd.s32 %v1016, %v1006
      %v1018 = vadd.s32 %v1017, %v1008
      %v1019 = vand.u32 %v996, 65535
      %v1020 = vshrl.u32 %v996, 16
      %v1021 = vand.u32 %v991, 65535
      %v1022 = vshrl.u32 %v991, 16
      %v1023 = vmul.u32 %v1019, %v1021
      %v1024 = vmul.u32 %v1019, %v1022
      %v1025 = vmul.u32 %v1020, %v1021
      %v1026 = vmul.u32 %v1020, %v1022
      %v1027 = vshll.u32 %v1024, 16
      %v1028 = vshrl.u32 %v1024, 16
      %v1029 = vshll.u32 %v1025, 16
      %v1030 = vshrl.u32 %v1025, 16
      %vm1031 = vc.u32 %v1023, %v1027
      %v1032 = vsel %vm1031, 1, 0
      %v1033 = vadd.s32 %v1023, %v1027
      %v1034 = vadd.s32 %v1026, %v1032
      %vm1035 = vc.u32 %v1033, %v1029
      %v1036 = vsel %vm1035, 1, 0
      %v1037 = vadd.s32 %v1033, %v1029
      %v1038 = vadd.s32 %v1034, %v1036
      %v1039 = vadd.s32 %v1038, %v1028
      %v1040 = vadd.s32 %v1039, %v1030
      %v1041 = vmul.u32 %v996, %v987
      %v1042 = vadd.s32 %v1018, %v1037
      %vm1043 = vc.u32 %v1018, %v1037
      %v1044 = vadd.s32 %v1040, 1
      %v1045 = vsel %vm1043, %v1044, %v1040
      %v1046 = vadd.s32 %v1041, %v1045
      %v1047 = vadd.s32 %v1046, 536870912
      %v1048 = vshrl.u32 %v1047, 30
      %v1049 = vshll.u32 %v1048, 30
      %v1050 = vsub.s32 %v1046, %v1049
      %vm1051 = vcmp.lt.s32.totalorder %v1050, 0
      %v1052 = vsub.s32 0, %v1050
      %v1053 = vsel %vm1051, %v1052, %v1050
      %v1054 = vclz %v1053
      %v1055 = vsub.s32 %v1054, 2
      %vm1056 = vcmp.gt.s32.totalorder 0, %v1055
      %v1057 = vsel %vm1056, 0, %v1055
      %v1058 = vsub.s32 32, %v1057
      %v1059 = vshll.u32 %v1050, %v1057
      %v1060 = vshrl.u32 %v1042, %v1058
      %v1061 = vor.u32 %v1059, %v1060
      %v1062 = vsub.s32 4294967266, %v1057
      %v1063 = vadd.s32 %v1062, 127
      %v1064 = vshll.u32 %v1063, 23
      %v1065 = vor.u32 4788187, %v1064
      %v1066 = vand.u32 2147483647, %v1065
      %v1068 = vcvt.s32.f32 %v1061
      %v1069 = vmul.f32 %v1068, %v1066
      %v1070 = vxor.u32 %v1069, 2147483648
      %v1071 = vsel %vm950, %v1070, %v1069
      %v1072 = vsub.s32 4, %v1048
      %v1073 = vsel %vm950, %v1072, %v1048
      %v1074 = vsel %vm949, %v478, %v1071
      %v1075 = vsel %vm949, 0, %v1073
      %v1076 = vmul.f32 %v1074, %v1074
      %v1077 = vmul.f32 %v1076, -0.001358992
      %v1078 = vadd.f32 %v1077, 0.041655596
      %v1079 = vmul.f32 %v1076, %v1078
      %v1080 = vadd.f32 %v1079, -0.4999988
      %v1081 = vmul.f32 %v1076, %v1080
      %v1082 = vadd.f32 1.0, %v1081
      %v1083 = vmul.f32 %v1074, %v1074
      %v1084 = vmul.f32 %v1083, -0.00019511016
      %v1085 = vadd.f32 %v1084, 0.008332121
      %v1086 = vmul.f32 %v1083, %v1085
      %v1087 = vadd.f32 %v1086, -0.16666654
      %v1088 = vmul.f32 %v1083, %v1087
      %v1089 = vadd.f32 %v1088, 1.0
      %v1090 = vmul.f32 %v1089, %v1074
      %vm1091 = vweird.f32 %v478
      %v1092 = vadd.s32 %v1075, 3
      %v1093 = vand.u32 %v1092, 3
      %vm1094 = vcmp.lt.s32.totalorder %v1093, 2
      %vm1095 = vcmp.eq.s32.totalorder %v1093, 0
      %v1096 = vxor.u32 %v1090, 2147483648
      %v1097 = vsel %vm1095, %v1082, %v1096
      %vm1098 = vcmp.eq.s32.totalorder %v1093, 2
      %v1099 = vxor.u32 %v1082, 2147483648
      %v1100 = vsel %vm1098, %v1099, %v1090
      %v1101 = vsel %vm1094, %v1097, %v1100
      %v1102 = vsel %vm1091, nan, %v1101
      %v1103 = vand.u32 2147483647, %v479
      %vm1104 = vcmp.le.f32.partialorder %v1103, 0.7853982
      %vm1105 = vcmp.lt.s32.totalorder %v479, 0
      %v1106 = vand.u32 %v479, 2139095040
      %v1107 = vshrl.u32 %v1106, 23
      %v1108 = vsub.s32 %v1107, 127
      %v1109 = vand.u32 2147483647, %v479
      %v1110 = vand.u32 %v1109, 8388607
      %v1111 = vor.u32 %v1110, 8388608
      %v1112 = vsub.s32 0, %v1111
      %v1113 = vadd.s32 %v1108, 1
      %vm1114 = vcmp.gt.s32.totalorder %v1113, 0
      %v1115 = vsel %vm1114, %v1113, 0
      %v1116 = vshrl.u32 %v1115, 5
      %v1117 = vand.u32 %v1115, 31
      %v1118 = vsub.s32 32, %v1117
      %v1119 = vshrl.u32 683565275, %v1118
      %v1120 = vshll.u32 683565275, %v1117
      %v1121 = vshrl.u32 2475754826, %v1118
      %v1122 = vor.u32 %v1120, %v1121
      %v1123 = vshll.u32 2475754826, %v1117
      %v1124 = vshrl.u32 2131351028, %v1118
      %v1125 = vor.u32 %v1123, %v1124
      %v1126 = vshll.u32 2131351028, %v1117
      %v1127 = vshrl.u32 2102212464, %v1118
      %v1128 = vor.u32 %v1126, %v1127
      %v1129 = vshll.u32 2102212464, %v1117
      %v1130 = vshrl.u32 920167782, %v1118
      %v1131 = vor.u32 %v1129, %v1130
      %v1132 = vshll.u32 920167782, %v1117
      %v1133 = vshrl.u32 1326507024, %v1118
      %v1134 = vor.u32 %v1132, %v1133
      %vm1135 = vcmp.lt.s32.totalorder %v1116, 1
      %vm1136 = vcmp.lt.s32.totalorder %v1116, 2
      %vm1137 = vcmp.lt.s32.totalorder %v1116, 3
      %vm1138 = vcmp.lt.s32.totalorder %v1116, 4
      %v1139 = vsel %vm1135, %v1119, %v1122
      %v1140 = vsel %vm1138, %v1128, 2102212464
      %v1141 = vsel %vm1137, %v1125, %v1140
      %v1142 = vsel %vm1136, %v1139, %v1141
      %v1143 = vsel %vm1135, %v1122, %v1125
      %v1144 = vsel %vm1138, %v1131, 920167782
      %v1145 = vsel %vm1137, %v1128, %v1144
      %v1146 = vsel %vm1136, %v1143, %v1145
      %v1147 = vsel %vm1135, %v1125, %v1128
      %v1148 = vsel %vm1138, %v1134, 1326507024
      %v1149 = vsel %vm1137, %v1131, %v1148
      %v1150 = vsel %vm1136, %v1147, %v1149
      %v1151 = vshll.u32 %v1111, 8
      %v1152 = vand.u32 %v1151, 65535
      %v1153 = vshrl.u32 %v1151, 16
      %v1154 = vand.u32 %v1150, 65535
      %v1155 = vshrl.u32 %v1150, 16
      %v1156 = vmul.u32 %v1152, %v1154
      %v1157 = vmul.u32 %v1152, %v1155
      %v1158 = vmul.u32 %v1153, %v1154
      %v1159 = vmul.u32 %v1153, %v1155
      %v1160 = vshll.u32 %v1157, 16
      %v1161 = vshrl.u32 %v1157, 16
      %v1162 = vshll.u32 %v1158, 16
      %v1163 = vshrl.u32 %v1158, 16
      %vm1164 = vc.u32 %v1156, %v1160
      %v1165 = vsel %vm1164, 1, 0
      %v1166 = vadd.s32 %v1156, %v1160
      %v1167 = vadd.s32 %v1159, %v1165
      %vm1168 = vc.u32 %v1166, %v1162
      %v1169 = vsel %vm1168, 1, 0
      %v1170 = vadd.s32 %v1166, %v1162
      %v1171 = vadd.s32 %v1167, %v1169
      %v1172 = vadd.s32 %v1171, %v1161
      %v1173 = vadd.s32 %v1172, %v1163
      %v1174 = vand.u32 %v1151, 65535
      %v1175 = vshrl.u32 %v1151, 16
      %v1176 = vand.u32 %v1146, 65535
      %v1177 = vshrl.u32 %v1146, 16
      %v1178 = vmul.u32 %v1174, %v1176
      %v1179 = vmul.u32 %v1174, %v1177
      %v1180 = vmul.u32 %v1175, %v1176
      %v1181 = vmul.u32 %v1175, %v1177
      %v1182 = vshll.u32 %v1179, 16
      %v1183 = vshrl.u32 %v1179, 16
      %v1184 = vshll.u32 %v1180, 16
      %v1185 = vshrl.u32 %v1180, 16
      %vm1186 = vc.u32 %v1178, %v1182
      %v1187 = vsel %vm1186, 1, 0
      %v1188 = vadd.s32 %v1178, %v1182
      %v1189 = vadd.s32 %v1181, %v1187
      %vm1190 = vc.u32 %v1188, %v1184
      %v1191 = vsel %vm1190, 1, 0
      %v1192 = vadd.s32 %v1188, %v1184
      %v1193 = vadd.s32 %v1189, %v1191
      %v1194 = vadd.s32 %v1193, %v1183
      %v1195 = vadd.s32 %v1194, %v1185
      %v1196 = vmul.u32 %v1151, %v1142
      %v1197 = vadd.s32 %v1173, %v1192
      %vm1198 = vc.u32 %v1173, %v1192
      %v1199 = vadd.s32 %v1195, 1
      %v1200 = vsel %vm1198, %v1199, %v1195
      %v1201 = vadd.s32 %v1196, %v1200
      %v1202 = vadd.s32 %v1201, 536870912
      %v1203 = vshrl.u32 %v1202, 30
      %v1204 = vshll.u32 %v1203, 30
      %v1205 = vsub.s32 %v1201, %v1204
      %vm1206 = vcmp.lt.s32.totalorder %v1205, 0
      %v1207 = vsub.s32 0, %v1205
      %v1208 = vsel %vm1206, %v1207, %v1205
      %v1209 = vclz %v1208
      %v1210 = vsub.s32 %v1209, 2
      %vm1211 = vcmp.gt.s32.totalorder 0, %v1210
      %v1212 = vsel %vm1211, 0, %v1210
      %v1213 = vsub.s32 32, %v1212
      %v1214 = vshll.u32 %v1205, %v1212
      %v1215 = vshrl.u32 %v1197, %v1213
      %v1216 = vor.u32 %v1214, %v1215
      %v1217 = vsub.s32 4294967266, %v1212
      %v1218 = vadd.s32 %v1217, 127
      %v1219 = vshll.u32 %v1218, 23
      %v1220 = vor.u32 4788187, %v1219
      %v1221 = vand.u32 2147483647, %v1220
      %v1223 = vcvt.s32.f32 %v1216
      %v1224 = vmul.f32 %v1223, %v1221
      %v1225 = vxor.u32 %v1224, 2147483648
      %v1226 = vsel %vm1105, %v1225, %v1224
      %v1227 = vsub.s32 4, %v1203
      %v1228 = vsel %vm1105, %v1227, %v1203
      %v1229 = vsel %vm1104, %v479, %v1226
      %v1230 = vsel %vm1104, 0, %v1228
      %v1231 = vmul.f32 %v1229, %v1229
      %v1232 = vmul.f32 %v1231, -0.001358992
      %v1233 = vadd.f32 %v1232, 0.041655596
      %v1234 = vmul.f32 %v1231, %v1233
      %v1235 = vadd.f32 %v1234, -0.4999988
      %v1236 = vmul.f32 %v1231, %v1235
      %v1237 = vadd.f32 1.0, %v1236
      %v1238 = vmul.f32 %v1229, %v1229
      %v1239 = vmul.f32 %v1238, -0.00019511016
      %v1240 = vadd.f32 %v1239, 0.008332121
      %v1241 = vmul.f32 %v1238, %v1240
      %v1242 = vadd.f32 %v1241, -0.16666654
      %v1243 = vmul.f32 %v1238, %v1242
      %v1244 = vadd.f32 %v1243, 1.0
      %v1245 = vmul.f32 %v1244, %v1229
      %vm1246 = vweird.f32 %v479
      %v1247 = vadd.s32 %v1230, 3
      %v1248 = vand.u32 %v1247, 3
      %vm1249 = vcmp.lt.s32.totalorder %v1248, 2
      %vm1250 = vcmp.eq.s32.totalorder %v1248, 0
      %v1251 = vxor.u32 %v1245, 2147483648
      %v1252 = vsel %vm1250, %v1237, %v1251
      %vm1253 = vcmp.eq.s32.totalorder %v1248, 2
      %v1254 = vxor.u32 %v1237, 2147483648
      %v1255 = vsel %vm1253, %v1254, %v1245
      %v1256 = vsel %vm1249, %v1252, %v1255
      %v1257 = vsel %vm1246, nan, %v1256
      %v1258 = vand.u32 2147483647, %v480
      %vm1259 = vcmp.le.f32.partialorder %v1258, 0.7853982
      %vm1260 = vcmp.lt.s32.totalorder %v480, 0
      %v1261 = vand.u32 %v480, 2139095040
      %v1262 = vshrl.u32 %v1261, 23
      %v1263 = vsub.s32 %v1262, 127
      %v1264 = vand.u32 2147483647, %v480
      %v1265 = vand.u32 %v1264, 8388607
      %v1266 = vor.u32 %v1265, 8388608
      %v1267 = vsub.s32 0, %v1266
      %v1268 = vadd.s32 %v1263, 1
      %vm1269 = vcmp.gt.s32.totalorder %v1268, 0
      %v1270 = vsel %vm1269, %v1268, 0
      %v1271 = vshrl.u32 %v1270, 5
      %v1272 = vand.u32 %v1270, 31
      %v1273 = vsub.s32 32, %v1272
      %v1274 = vshrl.u32 683565275, %v1273
      %v1275 = vshll.u32 683565275, %v1272
      %v1276 = vshrl.u32 2475754826, %v1273
      %v1277 = vor.u32 %v1275, %v1276
      %v1278 = vshll.u32 2475754826, %v1272
      %v1279 = vshrl.u32 2131351028, %v1273
      %v1280 = vor.u32 %v1278, %v1279
      %v1281 = vshll.u32 2131351028, %v1272
      %v1282 = vshrl.u32 2102212464, %v1273
      %v1283 = vor.u32 %v1281, %v1282
      %v1284 = vshll.u32 2102212464, %v1272
      %v1285 = vshrl.u32 920167782, %v1273
      %v1286 = vor.u32 %v1284, %v1285
      %v1287 = vshll.u32 920167782, %v1272
      %v1288 = vshrl.u32 1326507024, %v1273
      %v1289 = vor.u32 %v1287, %v1288
      %vm1290 = vcmp.lt.s32.totalorder %v1271, 1
      %vm1291 = vcmp.lt.s32.totalorder %v1271, 2
      %vm1292 = vcmp.lt.s32.totalorder %v1271, 3
      %vm1293 = vcmp.lt.s32.totalorder %v1271, 4
      %v1294 = vsel %vm1290, %v1274, %v1277
      %v1295 = vsel %vm1293, %v1283, 2102212464
      %v1296 = vsel %vm1292, %v1280, %v1295
      %v1297 = vsel %vm1291, %v1294, %v1296
      %v1298 = vsel %vm1290, %v1277, %v1280
      %v1299 = vsel %vm1293, %v1286, 920167782
      %v1300 = vsel %vm1292, %v1283, %v1299
      %v1301 = vsel %vm1291, %v1298, %v1300
      %v1302 = vsel %vm1290, %v1280, %v1283
      %v1303 = vsel %vm1293, %v1289, 1326507024
      %v1304 = vsel %vm1292, %v1286, %v1303
      %v1305 = vsel %vm1291, %v1302, %v1304
      %v1306 = vshll.u32 %v1266, 8
      %v1307 = vand.u32 %v1306, 65535
      %v1308 = vshrl.u32 %v1306, 16
      %v1309 = vand.u32 %v1305, 65535
      %v1310 = vshrl.u32 %v1305, 16
      %v1311 = vmul.u32 %v1307, %v1309
      %v1312 = vmul.u32 %v1307, %v1310
      %v1313 = vmul.u32 %v1308, %v1309
      %v1314 = vmul.u32 %v1308, %v1310
      %v1315 = vshll.u32 %v1312, 16
      %v1316 = vshrl.u32 %v1312, 16
      %v1317 = vshll.u32 %v1313, 16
      %v1318 = vshrl.u32 %v1313, 16
      %vm1319 = vc.u32 %v1311, %v1315
      %v1320 = vsel %vm1319, 1, 0
      %v1321 = vadd.s32 %v1311, %v1315
      %v1322 = vadd.s32 %v1314, %v1320
      %vm1323 = vc.u32 %v1321, %v1317
      %v1324 = vsel %vm1323, 1, 0
      %v1325 = vadd.s32 %v1321, %v1317
      %v1326 = vadd.s32 %v1322, %v1324
      %v1327 = vadd.s32 %v1326, %v1316
      %v1328 = vadd.s32 %v1327, %v1318
      %v1329 = vand.u32 %v1306, 65535
      %v1330 = vshrl.u32 %v1306, 16
      %v1331 = vand.u32 %v1301, 65535
      %v1332 = vshrl.u32 %v1301, 16
      %v1333 = vmul.u32 %v1329, %v1331
      %v1334 = vmul.u32 %v1329, %v1332
      %v1335 = vmul.u32 %v1330, %v1331
      %v1336 = vmul.u32 %v1330, %v1332
      %v1337 = vshll.u32 %v1334, 16
      %v1338 = vshrl.u32 %v1334, 16
      %v1339 = vshll.u32 %v1335, 16
      %v1340 = vshrl.u32 %v1335, 16
      %vm1341 = vc.u32 %v1333, %v1337
      %v1342 = vsel %vm1341, 1, 0
      %v1343 = vadd.s32 %v1333, %v1337
      %v1344 = vadd.s32 %v1336, %v1342
      %vm1345 = vc.u32 %v1343, %v1339
      %v1346 = vsel %vm1345, 1, 0
      %v1347 = vadd.s32 %v1343, %v1339
      %v1348 = vadd.s32 %v1344, %v1346
      %v1349 = vadd.s32 %v1348, %v1338
      %v1350 = vadd.s32 %v1349, %v1340
      %v1351 = vmul.u32 %v1306, %v1297
      %v1352 = vadd.s32 %v1328, %v1347
      %vm1353 = vc.u32 %v1328, %v1347
      %v1354 = vadd.s32 %v1350, 1
      %v1355 = vsel %vm1353, %v1354, %v1350
      %v1356 = vadd.s32 %v1351, %v1355
      %v1357 = vadd.s32 %v1356, 536870912
      %v1358 = vshrl.u32 %v1357, 30
      %v1359 = vshll.u32 %v1358, 30
      %v1360 = vsub.s32 %v1356, %v1359
      %vm1361 = vcmp.lt.s32.totalorder %v1360, 0
      %v1362 = vsub.s32 0, %v1360
      %v1363 = vsel %vm1361, %v1362, %v1360
      %v1364 = vclz %v1363
      %v1365 = vsub.s32 %v1364, 2
      %vm1366 = vcmp.gt.s32.totalorder 0, %v1365
      %v1367 = vsel %vm1366, 0, %v1365
      %v1368 = vsub.s32 32, %v1367
      %v1369 = vshll.u32 %v1360, %v1367
      %v1370 = vshrl.u32 %v1352, %v1368
      %v1371 = vor.u32 %v1369, %v1370
      %v1372 = vsub.s32 4294967266, %v1367
      %v1373 = vadd.s32 %v1372, 127
      %v1374 = vshll.u32 %v1373, 23
      %v1375 = vor.u32 4788187, %v1374
      %v1376 = vand.u32 2147483647, %v1375
      %v1378 = vcvt.s32.f32 %v1371
      %v1379 = vmul.f32 %v1378, %v1376
      %v1380 = vxor.u32 %v1379, 2147483648
      %v1381 = vsel %vm1260, %v1380, %v1379
      %v1382 = vsub.s32 4, %v1358
      %v1383 = vsel %vm1260, %v1382, %v1358
      %v1384 = vsel %vm1259, %v480, %v1381
      %v1385 = vsel %vm1259, 0, %v1383
      %v1386 = vmul.f32 %v1384, %v1384
      %v1387 = vmul.f32 %v1386, -0.001358992
      %v1388 = vadd.f32 %v1387, 0.041655596
      %v1389 = vmul.f32 %v1386, %v1388
      %v1390 = vadd.f32 %v1389, -0.4999988
      %v1391 = vmul.f32 %v1386, %v1390
      %v1392 = vadd.f32 1.0, %v1391
      %v1393 = vmul.f32 %v1384, %v1384
      %v1394 = vmul.f32 %v1393, -0.00019511016
      %v1395 = vadd.f32 %v1394, 0.008332121
      %v1396 = vmul.f32 %v1393, %v1395
      %v1397 = vadd.f32 %v1396, -0.16666654
      %v1398 = vmul.f32 %v1393, %v1397
      %v1399 = vadd.f32 %v1398, 1.0
      %v1400 = vmul.f32 %v1399, %v1384
      %vm1401 = vweird.f32 %v480
      %v1402 = vadd.s32 %v1385, 3
      %v1403 = vand.u32 %v1402, 3
      %vm1404 = vcmp.lt.s32.totalorder %v1403, 2
      %vm1405 = vcmp.eq.s32.totalorder %v1403, 0
      %v1406 = vxor.u32 %v1400, 2147483648
      %v1407 = vsel %vm1405, %v1392, %v1406
      %vm1408 = vcmp.eq.s32.totalorder %v1403, 2
      %v1409 = vxor.u32 %v1392, 2147483648
      %v1410 = vsel %vm1408, %v1409, %v1400
      %v1411 = vsel %vm1404, %v1407, %v1410
      %v1412 = vsel %vm1401, nan, %v1411
      %v1413 = vand.u32 2147483647, %v481
      %vm1414 = vcmp.le.f32.partialorder %v1413, 0.7853982
      %vm1415 = vcmp.lt.s32.totalorder %v481, 0
      %v1416 = vand.u32 %v481, 2139095040
      %v1417 = vshrl.u32 %v1416, 23
      %v1418 = vsub.s32 %v1417, 127
      %v1419 = vand.u32 2147483647, %v481
      %v1420 = vand.u32 %v1419, 8388607
      %v1421 = vor.u32 %v1420, 8388608
      %v1422 = vsub.s32 0, %v1421
      %v1423 = vadd.s32 %v1418, 1
      %vm1424 = vcmp.gt.s32.totalorder %v1423, 0
      %v1425 = vsel %vm1424, %v1423, 0
      %v1426 = vshrl.u32 %v1425, 5
      %v1427 = vand.u32 %v1425, 31
      %v1428 = vsub.s32 32, %v1427
      %v1429 = vshrl.u32 683565275, %v1428
      %v1430 = vshll.u32 683565275, %v1427
      %v1431 = vshrl.u32 2475754826, %v1428
      %v1432 = vor.u32 %v1430, %v1431
      %v1433 = vshll.u32 2475754826, %v1427
      %v1434 = vshrl.u32 2131351028, %v1428
      %v1435 = vor.u32 %v1433, %v1434
      %v1436 = vshll.u32 2131351028, %v1427
      %v1437 = vshrl.u32 2102212464, %v1428
      %v1438 = vor.u32 %v1436, %v1437
      %v1439 = vshll.u32 2102212464, %v1427
      %v1440 = vshrl.u32 920167782, %v1428
      %v1441 = vor.u32 %v1439, %v1440
      %v1442 = vshll.u32 920167782, %v1427
      %v1443 = vshrl.u32 1326507024, %v1428
      %v1444 = vor.u32 %v1442, %v1443
      %vm1445 = vcmp.lt.s32.totalorder %v1426, 1
      %vm1446 = vcmp.lt.s32.totalorder %v1426, 2
      %vm1447 = vcmp.lt.s32.totalorder %v1426, 3
      %vm1448 = vcmp.lt.s32.totalorder %v1426, 4
      %v1449 = vsel %vm1445, %v1429, %v1432
      %v1450 = vsel %vm1448, %v1438, 2102212464
      %v1451 = vsel %vm1447, %v1435, %v1450
      %v1452 = vsel %vm1446, %v1449, %v1451
      %v1453 = vsel %vm1445, %v1432, %v1435
      %v1454 = vsel %vm1448, %v1441, 920167782
      %v1455 = vsel %vm1447, %v1438, %v1454
      %v1456 = vsel %vm1446, %v1453, %v1455
      %v1457 = vsel %vm1445, %v1435, %v1438
      %v1458 = vsel %vm1448, %v1444, 1326507024
      %v1459 = vsel %vm1447, %v1441, %v1458
      %v1460 = vsel %vm1446, %v1457, %v1459
      %v1461 = vshll.u32 %v1421, 8
      %v1462 = vand.u32 %v1461, 65535
      %v1463 = vshrl.u32 %v1461, 16
      %v1464 = vand.u32 %v1460, 65535
      %v1465 = vshrl.u32 %v1460, 16
      %v1466 = vmul.u32 %v1462, %v1464
      %v1467 = vmul.u32 %v1462, %v1465
      %v1468 = vmul.u32 %v1463, %v1464
      %v1469 = vmul.u32 %v1463, %v1465
      %v1470 = vshll.u32 %v1467, 16
      %v1471 = vshrl.u32 %v1467, 16
      %v1472 = vshll.u32 %v1468, 16
      %v1473 = vshrl.u32 %v1468, 16
      %vm1474 = vc.u32 %v1466, %v1470
      %v1475 = vsel %vm1474, 1, 0
      %v1476 = vadd.s32 %v1466, %v1470
      %v1477 = vadd.s32 %v1469, %v1475
      %vm1478 = vc.u32 %v1476, %v1472
      %v1479 = vsel %vm1478, 1, 0
      %v1480 = vadd.s32 %v1476, %v1472
      %v1481 = vadd.s32 %v1477, %v1479
      %v1482 = vadd.s32 %v1481, %v1471
      %v1483 = vadd.s32 %v1482, %v1473
      %v1484 = vand.u32 %v1461, 65535
      %v1485 = vshrl.u32 %v1461, 16
      %v1486 = vand.u32 %v1456, 65535
      %v1487 = vshrl.u32 %v1456, 16
      %v1488 = vmul.u32 %v1484, %v1486
      %v1489 = vmul.u32 %v1484, %v1487
      %v1490 = vmul.u32 %v1485, %v1486
      %v1491 = vmul.u32 %v1485, %v1487
      %v1492 = vshll.u32 %v1489, 16
      %v1493 = vshrl.u32 %v1489, 16
      %v1494 = vshll.u32 %v1490, 16
      %v1495 = vshrl.u32 %v1490, 16
      %vm1496 = vc.u32 %v1488, %v1492
      %v1497 = vsel %vm1496, 1, 0
      %v1498 = vadd.s32 %v1488, %v1492
      %v1499 = vadd.s32 %v1491, %v1497
      %vm1500 = vc.u32 %v1498, %v1494
      %v1501 = vsel %vm1500, 1, 0
      %v1502 = vadd.s32 %v1498, %v1494
      %v1503 = vadd.s32 %v1499, %v1501
      %v1504 = vadd.s32 %v1503, %v1493
      %v1505 = vadd.s32 %v1504, %v1495
      %v1506 = vmul.u32 %v1461, %v1452
      %v1507 = vadd.s32 %v1483, %v1502
      %vm1508 = vc.u32 %v1483, %v1502
      %v1509 = vadd.s32 %v1505, 1
      %v1510 = vsel %vm1508, %v1509, %v1505
      %v1511 = vadd.s32 %v1506, %v1510
      %v1512 = vadd.s32 %v1511, 536870912
      %v1513 = vshrl.u32 %v1512, 30
      %v1514 = vshll.u32 %v1513, 30
      %v1515 = vsub.s32 %v1511, %v1514
      %vm1516 = vcmp.lt.s32.totalorder %v1515, 0
      %v1517 = vsub.s32 0, %v1515
      %v1518 = vsel %vm1516, %v1517, %v1515
      %v1519 = vclz %v1518
      %v1520 = vsub.s32 %v1519, 2
      %vm1521 = vcmp.gt.s32.totalorder 0, %v1520
      %v1522 = vsel %vm1521, 0, %v1520
      %v1523 = vsub.s32 32, %v1522
      %v1524 = vshll.u32 %v1515, %v1522
      %v1525 = vshrl.u32 %v1507, %v1523
      %v1526 = vor.u32 %v1524, %v1525
      %v1527 = vsub.s32 4294967266, %v1522
      %v1528 = vadd.s32 %v1527, 127
      %v1529 = vshll.u32 %v1528, 23
      %v1530 = vor.u32 4788187, %v1529
      %v1531 = vand.u32 2147483647, %v1530
      %v1533 = vcvt.s32.f32 %v1526
      %v1534 = vmul.f32 %v1533, %v1531
      %v1535 = vxor.u32 %v1534, 2147483648
      %v1536 = vsel %vm1415, %v1535, %v1534
      %v1537 = vsub.s32 4, %v1513
      %v1538 = vsel %vm1415, %v1537, %v1513
      %v1539 = vsel %vm1414, %v481, %v1536
      %v1540 = vsel %vm1414, 0, %v1538
      %v1541 = vmul.f32 %v1539, %v1539
      %v1542 = vmul.f32 %v1541, -0.001358992
      %v1543 = vadd.f32 %v1542, 0.041655596
      %v1544 = vmul.f32 %v1541, %v1543
      %v1545 = vadd.f32 %v1544, -0.4999988
      %v1546 = vmul.f32 %v1541, %v1545
      %v1547 = vadd.f32 1.0, %v1546
      %v1548 = vmul.f32 %v1539, %v1539
      %v1549 = vmul.f32 %v1548, -0.00019511016
      %v1550 = vadd.f32 %v1549, 0.008332121
      %v1551 = vmul.f32 %v1548, %v1550
      %v1552 = vadd.f32 %v1551, -0.16666654
      %v1553 = vmul.f32 %v1548, %v1552
      %v1554 = vadd.f32 %v1553, 1.0
      %v1555 = vmul.f32 %v1554, %v1539
      %vm1556 = vweird.f32 %v481
      %v1557 = vadd.s32 %v1540, 3
      %v1558 = vand.u32 %v1557, 3
      %vm1559 = vcmp.lt.s32.totalorder %v1558, 2
      %vm1560 = vcmp.eq.s32.totalorder %v1558, 0
      %v1561 = vxor.u32 %v1555, 2147483648
      %v1562 = vsel %vm1560, %v1547, %v1561
      %vm1563 = vcmp.eq.s32.totalorder %v1558, 2
      %v1564 = vxor.u32 %v1547, 2147483648
      %v1565 = vsel %vm1563, %v1564, %v1555
      %v1566 = vsel %vm1559, %v1562, %v1565
      %v1567 = vsel %vm1556, nan, %v1566
      %v1568 = vand.u32 2147483647, %v482
      %vm1569 = vcmp.le.f32.partialorder %v1568, 0.7853982
      %vm1570 = vcmp.lt.s32.totalorder %v482, 0
      %v1571 = vand.u32 %v482, 2139095040
      %v1572 = vshrl.u32 %v1571, 23
      %v1573 = vsub.s32 %v1572, 127
      %v1574 = vand.u32 2147483647, %v482
      %v1575 = vand.u32 %v1574, 8388607
      %v1576 = vor.u32 %v1575, 8388608
      %v1577 = vsub.s32 0, %v1576
      %v1578 = vadd.s32 %v1573, 1
      %vm1579 = vcmp.gt.s32.totalorder %v1578, 0
      %v1580 = vsel %vm1579, %v1578, 0
      %v1581 = vshrl.u32 %v1580, 5
      %v1582 = vand.u32 %v1580, 31
      %v1583 = vsub.s32 32, %v1582
      %v1584 = vshrl.u32 683565275, %v1583
      %v1585 = vshll.u32 683565275, %v1582
      %v1586 = vshrl.u32 2475754826, %v1583
      %v1587 = vor.u32 %v1585, %v1586
      %v1588 = vshll.u32 2475754826, %v1582
      %v1589 = vshrl.u32 2131351028, %v1583
      %v1590 = vor.u32 %v1588, %v1589
      %v1591 = vshll.u32 2131351028, %v1582
      %v1592 = vshrl.u32 2102212464, %v1583
      %v1593 = vor.u32 %v1591, %v1592
      %v1594 = vshll.u32 2102212464, %v1582
      %v1595 = vshrl.u32 920167782, %v1583
      %v1596 = vor.u32 %v1594, %v1595
      %v1597 = vshll.u32 920167782, %v1582
      %v1598 = vshrl.u32 1326507024, %v1583
      %v1599 = vor.u32 %v1597, %v1598
      %vm1600 = vcmp.lt.s32.totalorder %v1581, 1
      %vm1601 = vcmp.lt.s32.totalorder %v1581, 2
      %vm1602 = vcmp.lt.s32.totalorder %v1581, 3
      %vm1603 = vcmp.lt.s32.totalorder %v1581, 4
      %v1604 = vsel %vm1600, %v1584, %v1587
      %v1605 = vsel %vm1603, %v1593, 2102212464
      %v1606 = vsel %vm1602, %v1590, %v1605
      %v1607 = vsel %vm1601, %v1604, %v1606
      %v1608 = vsel %vm1600, %v1587, %v1590
      %v1609 = vsel %vm1603, %v1596, 920167782
      %v1610 = vsel %vm1602, %v1593, %v1609
      %v1611 = vsel %vm1601, %v1608, %v1610
      %v1612 = vsel %vm1600, %v1590, %v1593
      %v1613 = vsel %vm1603, %v1599, 1326507024
      %v1614 = vsel %vm1602, %v1596, %v1613
      %v1615 = vsel %vm1601, %v1612, %v1614
      %v1616 = vshll.u32 %v1576, 8
      %v1617 = vand.u32 %v1616, 65535
      %v1618 = vshrl.u32 %v1616, 16
      %v1619 = vand.u32 %v1615, 65535
      %v1620 = vshrl.u32 %v1615, 16
      %v1621 = vmul.u32 %v1617, %v1619
      %v1622 = vmul.u32 %v1617, %v1620
      %v1623 = vmul.u32 %v1618, %v1619
      %v1624 = vmul.u32 %v1618, %v1620
      %v1625 = vshll.u32 %v1622, 16
      %v1626 = vshrl.u32 %v1622, 16
      %v1627 = vshll.u32 %v1623, 16
      %v1628 = vshrl.u32 %v1623, 16
      %vm1629 = vc.u32 %v1621, %v1625
      %v1630 = vsel %vm1629, 1, 0
      %v1631 = vadd.s32 %v1621, %v1625
      %v1632 = vadd.s32 %v1624, %v1630
      %vm1633 = vc.u32 %v1631, %v1627
      %v1634 = vsel %vm1633, 1, 0
      %v1635 = vadd.s32 %v1631, %v1627
      %v1636 = vadd.s32 %v1632, %v1634
      %v1637 = vadd.s32 %v1636, %v1626
      %v1638 = vadd.s32 %v1637, %v1628
      %v1639 = vand.u32 %v1616, 65535
      %v1640 = vshrl.u32 %v1616, 16
      %v1641 = vand.u32 %v1611, 65535
      %v1642 = vshrl.u32 %v1611, 16
      %v1643 = vmul.u32 %v1639, %v1641
      %v1644 = vmul.u32 %v1639, %v1642
      %v1645 = vmul.u32 %v1640, %v1641
      %v1646 = vmul.u32 %v1640, %v1642
      %v1647 = vshll.u32 %v1644, 16
      %v1648 = vshrl.u32 %v1644, 16
      %v1649 = vshll.u32 %v1645, 16
      %v1650 = vshrl.u32 %v1645, 16
      %vm1651 = vc.u32 %v1643, %v1647
      %v1652 = vsel %vm1651, 1, 0
      %v1653 = vadd.s32 %v1643, %v1647
      %v1654 = vadd.s32 %v1646, %v1652
      %vm1655 = vc.u32 %v1653, %v1649
      %v1656 = vsel %vm1655, 1, 0
      %v1657 = vadd.s32 %v1653, %v1649
      %v1658 = vadd.s32 %v1654, %v1656
      %v1659 = vadd.s32 %v1658, %v1648
      %v1660 = vadd.s32 %v1659, %v1650
      %v1661 = vmul.u32 %v1616, %v1607
      %v1662 = vadd.s32 %v1638, %v1657
      %vm1663 = vc.u32 %v1638, %v1657
      %v1664 = vadd.s32 %v1660, 1
      %v1665 = vsel %vm1663, %v1664, %v1660
      %v1666 = vadd.s32 %v1661, %v1665
      %v1667 = vadd.s32 %v1666, 536870912
      %v1668 = vshrl.u32 %v1667, 30
      %v1669 = vshll.u32 %v1668, 30
      %v1670 = vsub.s32 %v1666, %v1669
      %vm1671 = vcmp.lt.s32.totalorder %v1670, 0
      %v1672 = vsub.s32 0, %v1670
      %v1673 = vsel %vm1671, %v1672, %v1670
      %v1674 = vclz %v1673
      %v1675 = vsub.s32 %v1674, 2
      %vm1676 = vcmp.gt.s32.totalorder 0, %v1675
      %v1677 = vsel %vm1676, 0, %v1675
      %v1678 = vsub.s32 32, %v1677
      %v1679 = vshll.u32 %v1670, %v1677
      %v1680 = vshrl.u32 %v1662, %v1678
      %v1681 = vor.u32 %v1679, %v1680
      %v1682 = vsub.s32 4294967266, %v1677
      %v1683 = vadd.s32 %v1682, 127
      %v1684 = vshll.u32 %v1683, 23
      %v1685 = vor.u32 4788187, %v1684
      %v1686 = vand.u32 2147483647, %v1685
      %v1688 = vcvt.s32.f32 %v1681
      %v1689 = vmul.f32 %v1688, %v1686
      %v1690 = vxor.u32 %v1689, 2147483648
      %v1691 = vsel %vm1570, %v1690, %v1689
      %v1692 = vsub.s32 4, %v1668
      %v1693 = vsel %vm1570, %v1692, %v1668
      %v1694 = vsel %vm1569, %v482, %v1691
      %v1695 = vsel %vm1569, 0, %v1693
      %v1696 = vmul.f32 %v1694, %v1694
      %v1697 = vmul.f32 %v1696, -0.001358992
      %v1698 = vadd.f32 %v1697, 0.041655596
      %v1699 = vmul.f32 %v1696, %v1698
      %v1700 = vadd.f32 %v1699, -0.4999988
      %v1701 = vmul.f32 %v1696, %v1700
      %v1702 = vadd.f32 1.0, %v1701
      %v1703 = vmul.f32 %v1694, %v1694
      %v1704 = vmul.f32 %v1703, -0.00019511016
      %v1705 = vadd.f32 %v1704, 0.008332121
      %v1706 = vmul.f32 %v1703, %v1705
      %v1707 = vadd.f32 %v1706, -0.16666654
      %v1708 = vmul.f32 %v1703, %v1707
      %v1709 = vadd.f32 %v1708, 1.0
      %v1710 = vmul.f32 %v1709, %v1694
      %vm1711 = vweird.f32 %v482
      %v1712 = vadd.s32 %v1695, 3
      %v1713 = vand.u32 %v1712, 3
      %vm1714 = vcmp.lt.s32.totalorder %v1713, 2
      %vm1715 = vcmp.eq.s32.totalorder %v1713, 0
      %v1716 = vxor.u32 %v1710, 2147483648
      %v1717 = vsel %vm1715, %v1702, %v1716
      %vm1718 = vcmp.eq.s32.totalorder %v1713, 2
      %v1719 = vxor.u32 %v1702, 2147483648
      %v1720 = vsel %vm1718, %v1719, %v1710
      %v1721 = vsel %vm1714, %v1717, %v1720
      %v1722 = vsel %vm1711, nan, %v1721
      %v1723 = vld [vmem:[%s3] sm:$0xf]
      %v1724 = vld [vmem:[%s3 + $0x4] sm:$0xf]
      %v1725 = vld [vmem:[%s3 + $0x8] sm:$0xf]
      %v1726 = vld [vmem:[%s3 + $0xc] sm:$0xf]
      %v1727 = vld [vmem:[%s3 + $0x10] sm:$0xf]
      %v1728 = vld [vmem:[%s3 + $0x14] sm:$0xf]
      %v1729 = vld [vmem:[%s3 + $0x18] sm:$0xf]
      %v1730 = vld [vmem:[%s3 + $0x1c] sm:$0xf]
      %v1731 = vpack.c.bf16 %v947, %v637
      %v1732 = vpack.c.bf16 %v1102, %v792
      %v1733 = vpack.c.bf16 %v1567, %v1257
      %v1734 = vpack.c.bf16 %v1722, %v1412
      %v1735 = vld [vmem:[%s4] sm:$0xff]
      %v1736 = vld [vmem:[%s4 + $0x8] sm:$0xff]
      %v1737 = vld [vmem:[%s4 + $0x10] sm:$0xff]
      %v1738 = vld [vmem:[%s4 + $0x18] sm:$0xff]
      %v1739 = vld [vmem:[%s4 + $0x20] sm:$0xff]
      %v1740 = vld [vmem:[%s4 + $0x28] sm:$0xff]
      %v1741 = vld [vmem:[%s4 + $0x30] sm:$0xff]
      %v1742 = vld [vmem:[%s4 + $0x38] sm:$0xff]
      %1744 = vset.pattern.permute.xlu0 0
      %1745 = vperm.xlu0 %1744, %v1735
      %v1746 = vpop.permute.xlu0 %1745
      %1749 = vset.pattern.permute.xlu0 0
      %1750 = vperm.xlu0 %1749, %v1736
      %v1751 = vpop.permute.xlu0 %1750
      %1754 = vset.pattern.permute.xlu0 0
      %1755 = vperm.xlu0 %1754, %v1737
      %v1756 = vpop.permute.xlu0 %1755
      %1759 = vset.pattern.permute.xlu0 0
      %1760 = vperm.xlu0 %1759, %v1738
      %v1761 = vpop.permute.xlu0 %1760
      %1764 = vset.pattern.permute.xlu0 0
      %1765 = vperm.xlu0 %1764, %v1739
      %v1766 = vpop.permute.xlu0 %1765
      %1769 = vset.pattern.permute.xlu0 0
      %1770 = vperm.xlu0 %1769, %v1740
      %v1771 = vpop.permute.xlu0 %1770
      %1774 = vset.pattern.permute.xlu0 0
      %1775 = vperm.xlu0 %1774, %v1741
      %v1776 = vpop.permute.xlu0 %1775
      %1779 = vset.pattern.permute.xlu0 0
      %1780 = vperm.xlu0 %1779, %v1742
      %v1781 = vpop.permute.xlu0 %1780
      %v1791 = vunpack.c.l.b16 %v1723
      %v1792 = vunpack.c.l.b16 %v1724
      %v1793 = vunpack.c.l.b16 %v1725
      %v1794 = vunpack.c.l.b16 %v1726
      %v1795 = vunpack.c.l.b16 %v1727
      %v1796 = vunpack.c.l.b16 %v1728
      %v1797 = vunpack.c.l.b16 %v1729
      %v1798 = vunpack.c.l.b16 %v1730
      %v1799 = vpack.c.b16 %v1792, %v1791
      %v1800 = vpack.c.b16 %v1794, %v1793
      %v1801 = vpack.c.b16 %v1796, %v1795
      %v1802 = vpack.c.b16 %v1798, %v1797
      %vm1803 = vcmask 244736
      %v1805 = vsel %vm1803, %v1799, 0
      %v1808 = vsel %vm1803, %v1800, 0
      %v1811 = vsel %vm1803, %v1801, 0
      %v1814 = vsel %vm1803, %v1802, 0
      %vm1816 = vcmask 1046528
      %v1818 = vsel %vm1816, %v1733, 0
      %v1821 = vsel %vm1816, %v1734, 0
      %1823 = vmatpush.bf16.msra.mxu0 0
      %1824 = vmatpush.bf16.msra.mxu0 0
      %1825 = vmatpush.bf16.msra.mxu0 0
      %1826 = vmatpush.bf16.msra.mxu0 0
      %1827 = vmatpush.bf16.msra.mxu0 0
      %1828 = vmatpush.bf16.msra.mxu0 0
      %1829 = vmatpush.bf16.msra.mxu0 %v1818
      %1830 = vmatpush.bf16.msra.mxu0 %v1731
      %1831 = vmatmul.bf16.gmra.mxu0 %v1805
      %v1832 = vpop.f32.mrf.mxu0
      %v1833 = vadd.f32 %v1746, %v1832
      %v1834 = vpop.f32.mrf.mxu0
      %v1835 = vadd.f32 %v1751, %v1834
      %1836 = vmatmul.bf16.gmra.mxu0 %v1808
      %v1837 = vpop.f32.mrf.mxu0
      %v1838 = vadd.f32 %v1756, %v1837
      %v1839 = vpop.f32.mrf.mxu0
      %v1840 = vadd.f32 %v1761, %v1839
      %1841 = vmatmul.bf16.gmra.mxu0 %v1811
      %v1842 = vpop.f32.mrf.mxu0
      %v1843 = vadd.f32 %v1766, %v1842
      %v1844 = vpop.f32.mrf.mxu0
      %v1845 = vadd.f32 %v1771, %v1844
      %1846 = vmatmul.bf16.gmra.mxu0 %v1814
      %v1847 = vpop.f32.mrf.mxu0
      %v1848 = vadd.f32 %v1776, %v1847
      %v1849 = vpop.f32.mrf.mxu0
      %v1850 = vadd.f32 %v1781, %v1849
      %1851 = vdwg.mxu0
      %1852 = vmatpush.bf16.msra.mxu0 0
      %1853 = vmatpush.bf16.msra.mxu0 0
      %1854 = vmatpush.bf16.msra.mxu0 0
      %1855 = vmatpush.bf16.msra.mxu0 0
      %1856 = vmatpush.bf16.msra.mxu0 0
      %1857 = vmatpush.bf16.msra.mxu0 0
      %1858 = vmatpush.bf16.msra.mxu0 %v1821
      %1859 = vmatpush.bf16.msra.mxu0 %v1732
      %1860 = vmatmul.bf16.gmra.mxu0 %v1805
      %v1861 = vpop.f32.mrf.mxu0
      %v1862 = vadd.f32 %v1746, %v1861
      %v1863 = vpop.f32.mrf.mxu0
      %v1864 = vadd.f32 %v1751, %v1863
      %1865 = vmatmul.bf16.gmra.mxu0 %v1808
      %v1866 = vpop.f32.mrf.mxu0
      %v1867 = vadd.f32 %v1756, %v1866
      %v1868 = vpop.f32.mrf.mxu0
      %v1869 = vadd.f32 %v1761, %v1868
      %1870 = vmatmul.bf16.gmra.mxu0 %v1811
      %v1871 = vpop.f32.mrf.mxu0
      %v1872 = vadd.f32 %v1766, %v1871
      %v1873 = vpop.f32.mrf.mxu0
      %v1874 = vadd.f32 %v1771, %v1873
      %1875 = vmatmul.bf16.gmra.mxu0 %v1814
      %v1876 = vpop.f32.mrf.mxu0
      %v1877 = vadd.f32 %v1776, %v1876
      %v1878 = vpop.f32.mrf.mxu0
      %v1879 = vadd.f32 %v1781, %v1878
      %1880 = vdwg.mxu0
      %vm1881 = vcmp.ge.f32.partialorder %v1833, 0.0
      %vm1882 = vcmp.ge.f32.partialorder %v1862, 0.0
      %vm1883 = vcmp.ge.f32.partialorder %v1835, 0.0
      %vm1884 = vcmp.ge.f32.partialorder %v1864, 0.0
      %vm1885 = vcmp.ge.f32.partialorder %v1838, 0.0
      %vm1886 = vcmp.ge.f32.partialorder %v1867, 0.0
      %vm1887 = vcmp.ge.f32.partialorder %v1840, 0.0
      %vm1888 = vcmp.ge.f32.partialorder %v1869, 0.0
      %vm1889 = vcmp.ge.f32.partialorder %v1843, 0.0
      %vm1890 = vcmp.ge.f32.partialorder %v1872, 0.0
      %vm1891 = vcmp.ge.f32.partialorder %v1845, 0.0
      %vm1892 = vcmp.ge.f32.partialorder %v1874, 0.0
      %vm1893 = vcmp.ge.f32.partialorder %v1848, 0.0
      %vm1894 = vcmp.ge.f32.partialorder %v1877, 0.0
      %vm1895 = vcmp.ge.f32.partialorder %v1850, 0.0
      %vm1896 = vcmp.ge.f32.partialorder %v1879, 0.0
      %v1897 = vmul.f32 %v1833, 0.01
      %v1898 = vmul.f32 %v1862, 0.01
      %v1899 = vmul.f32 %v1835, 0.01
      %v1900 = vmul.f32 %v1864, 0.01
      %v1901 = vmul.f32 %v1838, 0.01
      %v1902 = vmul.f32 %v1867, 0.01
      %v1903 = vmul.f32 %v1840, 0.01
      %v1904 = vmul.f32 %v1869, 0.01
      %v1905 = vmul.f32 %v1843, 0.01
      %v1906 = vmul.f32 %v1872, 0.01
      %v1907 = vmul.f32 %v1845, 0.01
      %v1908 = vmul.f32 %v1874, 0.01
      %v1909 = vmul.f32 %v1848, 0.01
      %v1910 = vmul.f32 %v1877, 0.01
      %v1911 = vmul.f32 %v1850, 0.01
      %v1912 = vmul.f32 %v1879, 0.01
      %v1913 = vsel %vm1881, %v1833, %v1897
      %v1914 = vsel %vm1882, %v1862, %v1898
      %v1915 = vsel %vm1883, %v1835, %v1899
      %v1916 = vsel %vm1884, %v1864, %v1900
      %v1917 = vsel %vm1885, %v1838, %v1901
      %v1918 = vsel %vm1886, %v1867, %v1902
      %v1919 = vsel %vm1887, %v1840, %v1903
      %v1920 = vsel %vm1888, %v1869, %v1904
      %v1921 = vsel %vm1889, %v1843, %v1905
      %v1922 = vsel %vm1890, %v1872, %v1906
      %v1923 = vsel %vm1891, %v1845, %v1907
      %v1924 = vsel %vm1892, %v1874, %v1908
      %v1925 = vsel %vm1893, %v1848, %v1909
      %v1926 = vsel %vm1894, %v1877, %v1910
      %v1927 = vsel %vm1895, %v1850, %v1911
      %v1928 = vsel %vm1896, %v1879, %v1912
      %v1929 = vld [vmem:[%s5] sm:$0xf]
      %v1930 = vld [vmem:[%s5 + $0x4] sm:$0xf]
      %v1931 = vld [vmem:[%s5 + $0x8] sm:$0xf]
      %v1932 = vld [vmem:[%s5 + $0xc] sm:$0xf]
      %v1933 = vld [vmem:[%s5 + $0x10] sm:$0xf]
      %v1934 = vld [vmem:[%s5 + $0x14] sm:$0xf]
      %v1935 = vld [vmem:[%s5 + $0x18] sm:$0xf]
      %v1936 = vld [vmem:[%s5 + $0x1c] sm:$0xf]
      %v1937 = vpack.c.bf16 %v1915, %v1913
      %v1938 = vpack.c.bf16 %v1916, %v1914
      %v1939 = vpack.c.bf16 %v1919, %v1917
      %v1940 = vpack.c.bf16 %v1920, %v1918
      %v1941 = vpack.c.bf16 %v1923, %v1921
      %v1942 = vpack.c.bf16 %v1924, %v1922
      %v1943 = vpack.c.bf16 %v1927, %v1925
      %v1944 = vpack.c.bf16 %v1928, %v1926
      %v1945 = vld [vmem:[%s6] sm:$0xff]
      %v1946 = vld [vmem:[%s6 + $0x8] sm:$0xff]
      %v1947 = vld [vmem:[%s6 + $0x10] sm:$0xff]
      %v1948 = vld [vmem:[%s6 + $0x18] sm:$0xff]
      %v1949 = vld [vmem:[%s6 + $0x20] sm:$0xff]
      %v1950 = vld [vmem:[%s6 + $0x28] sm:$0xff]
      %v1951 = vld [vmem:[%s6 + $0x30] sm:$0xff]
      %v1952 = vld [vmem:[%s6 + $0x38] sm:$0xff]
      %1954 = vset.pattern.permute.xlu0 0
      %1955 = vperm.xlu0 %1954, %v1945
      %v1956 = vpop.permute.xlu0 %1955
      %1959 = vset.pattern.permute.xlu0 0
      %1960 = vperm.xlu0 %1959, %v1946
      %v1961 = vpop.permute.xlu0 %1960
      %1964 = vset.pattern.permute.xlu0 0
      %1965 = vperm.xlu0 %1964, %v1947
      %v1966 = vpop.permute.xlu0 %1965
      %1969 = vset.pattern.permute.xlu0 0
      %1970 = vperm.xlu0 %1969, %v1948
      %v1971 = vpop.permute.xlu0 %1970
      %1974 = vset.pattern.permute.xlu0 0
      %1975 = vperm.xlu0 %1974, %v1949
      %v1976 = vpop.permute.xlu0 %1975
      %1979 = vset.pattern.permute.xlu0 0
      %1980 = vperm.xlu0 %1979, %v1950
      %v1981 = vpop.permute.xlu0 %1980
      %1984 = vset.pattern.permute.xlu0 0
      %1985 = vperm.xlu0 %1984, %v1951
      %v1986 = vpop.permute.xlu0 %1985
      %1989 = vset.pattern.permute.xlu0 0
      %1990 = vperm.xlu0 %1989, %v1952
      %v1991 = vpop.permute.xlu0 %1990
      %v2001 = vunpack.c.l.b16 %v1929
      %v2002 = vunpack.c.l.b16 %v1930
      %v2003 = vunpack.c.l.b16 %v1931
      %v2004 = vunpack.c.l.b16 %v1932
      %v2005 = vunpack.c.l.b16 %v1933
      %v2006 = vunpack.c.l.b16 %v1934
      %v2007 = vunpack.c.l.b16 %v1935
      %v2008 = vunpack.c.l.b16 %v1936
      %v2009 = vpack.c.b16 %v2002, %v2001
      %v2010 = vpack.c.b16 %v2004, %v2003
      %v2011 = vpack.c.b16 %v2006, %v2005
      %v2012 = vpack.c.b16 %v2008, %v2007
      %vm2013 = vcmask 523264
      %v2015 = vsel %vm2013, %v2009, 0
      %v2018 = vsel %vm2013, %v2010, 0
      %v2021 = vsel %vm2013, %v2011, 0
      %v2024 = vsel %vm2013, %v2012, 0
      %2026 = vmatpush.bf16.msra.mxu0 0
      %2027 = vmatpush.bf16.msra.mxu0 0
      %2028 = vmatpush.bf16.msra.mxu0 0
      %2029 = vmatpush.bf16.msra.mxu0 0
      %2030 = vmatpush.bf16.msra.mxu0 %v1943
      %2031 = vmatpush.bf16.msra.mxu0 %v1941
      %2032 = vmatpush.bf16.msra.mxu0 %v1939
      %2033 = vmatpush.bf16.msra.mxu0 %v1937
      %2034 = vmatmul.bf16.gmra.mxu0 %v2015
      %v2035 = vpop.f32.mrf.mxu0
      %v2036 = vadd.f32 %v1956, %v2035
      %v2037 = vpop.f32.mrf.mxu0
      %v2038 = vadd.f32 %v1961, %v2037
      %2039 = vmatmul.bf16.gmra.mxu0 %v2018
      %v2040 = vpop.f32.mrf.mxu0
      %v2041 = vadd.f32 %v1966, %v2040
      %v2042 = vpop.f32.mrf.mxu0
      %v2043 = vadd.f32 %v1971, %v2042
      %2044 = vmatmul.bf16.gmra.mxu0 %v2021
      %v2045 = vpop.f32.mrf.mxu0
      %v2046 = vadd.f32 %v1976, %v2045
      %v2047 = vpop.f32.mrf.mxu0
      %v2048 = vadd.f32 %v1981, %v2047
      %2049 = vmatmul.bf16.gmra.mxu0 %v2024
      %v2050 = vpop.f32.mrf.mxu0
      %v2051 = vadd.f32 %v1986, %v2050
      %v2052 = vpop.f32.mrf.mxu0
      %v2053 = vadd.f32 %v1991, %v2052
      %2054 = vdwg.mxu0
      %2055 = vmatpush.bf16.msra.mxu0 0
      %2056 = vmatpush.bf16.msra.mxu0 0
      %2057 = vmatpush.bf16.msra.mxu0 0
      %2058 = vmatpush.bf16.msra.mxu0 0
      %2059 = vmatpush.bf16.msra.mxu0 %v1944
      %2060 = vmatpush.bf16.msra.mxu0 %v1942
      %2061 = vmatpush.bf16.msra.mxu0 %v1940
      %2062 = vmatpush.bf16.msra.mxu0 %v1938
      %2063 = vmatmul.bf16.gmra.mxu0 %v2015
      %v2064 = vpop.f32.mrf.mxu0
      %v2065 = vadd.f32 %v1956, %v2064
      %v2066 = vpop.f32.mrf.mxu0
      %v2067 = vadd.f32 %v1961, %v2066
      %2068 = vmatmul.bf16.gmra.mxu0 %v2018
      %v2069 = vpop.f32.mrf.mxu0
      %v2070 = vadd.f32 %v1966, %v2069
      %v2071 = vpop.f32.mrf.mxu0
      %v2072 = vadd.f32 %v1971, %v2071
      %2073 = vmatmul.bf16.gmra.mxu0 %v2021
      %v2074 = vpop.f32.mrf.mxu0
      %v2075 = vadd.f32 %v1976, %v2074
      %v2076 = vpop.f32.mrf.mxu0
      %v2077 = vadd.f32 %v1981, %v2076
      %2078 = vmatmul.bf16.gmra.mxu0 %v2024
      %v2079 = vpop.f32.mrf.mxu0
      %v2080 = vadd.f32 %v1986, %v2079
      %v2081 = vpop.f32.mrf.mxu0
      %v2082 = vadd.f32 %v1991, %v2081
      %2083 = vdwg.mxu0
      %vm2084 = vcmp.ge.f32.partialorder %v2036, 0.0
      %vm2085 = vcmp.ge.f32.partialorder %v2065, 0.0
      %vm2086 = vcmp.ge.f32.partialorder %v2038, 0.0
      %vm2087 = vcmp.ge.f32.partialorder %v2067, 0.0
      %vm2088 = vcmp.ge.f32.partialorder %v2041, 0.0
      %vm2089 = vcmp.ge.f32.partialorder %v2070, 0.0
      %vm2090 = vcmp.ge.f32.partialorder %v2043, 0.0
      %vm2091 = vcmp.ge.f32.partialorder %v2072, 0.0
      %vm2092 = vcmp.ge.f32.partialorder %v2046, 0.0
      %vm2093 = vcmp.ge.f32.partialorder %v2075, 0.0
      %vm2094 = vcmp.ge.f32.partialorder %v2048, 0.0
      %vm2095 = vcmp.ge.f32.partialorder %v2077, 0.0
      %vm2096 = vcmp.ge.f32.partialorder %v2051, 0.0
      %vm2097 = vcmp.ge.f32.partialorder %v2080, 0.0
      %vm2098 = vcmp.ge.f32.partialorder %v2053, 0.0
      %vm2099 = vcmp.ge.f32.partialorder %v2082, 0.0
      %v2100 = vmul.f32 %v2036, 0.01
      %v2101 = vmul.f32 %v2065, 0.01
      %v2102 = vmul.f32 %v2038, 0.01
      %v2103 = vmul.f32 %v2067, 0.01
      %v2104 = vmul.f32 %v2041, 0.01
      %v2105 = vmul.f32 %v2070, 0.01
      %v2106 = vmul.f32 %v2043, 0.01
      %v2107 = vmul.f32 %v2072, 0.01
      %v2108 = vmul.f32 %v2046, 0.01
      %v2109 = vmul.f32 %v2075, 0.01
      %v2110 = vmul.f32 %v2048, 0.01
      %v2111 = vmul.f32 %v2077, 0.01
      %v2112 = vmul.f32 %v2051, 0.01
      %v2113 = vmul.f32 %v2080, 0.01
      %v2114 = vmul.f32 %v2053, 0.01
      %v2115 = vmul.f32 %v2082, 0.01
      %v2116 = vsel %vm2084, %v2036, %v2100
      %v2117 = vsel %vm2085, %v2065, %v2101
      %v2118 = vsel %vm2086, %v2038, %v2102
      %v2119 = vsel %vm2087, %v2067, %v2103
      %v2120 = vsel %vm2088, %v2041, %v2104
      %v2121 = vsel %vm2089, %v2070, %v2105
      %v2122 = vsel %vm2090, %v2043, %v2106
      %v2123 = vsel %vm2091, %v2072, %v2107
      %v2124 = vsel %vm2092, %v2046, %v2108
      %v2125 = vsel %vm2093, %v2075, %v2109
      %v2126 = vsel %vm2094, %v2048, %v2110
      %v2127 = vsel %vm2095, %v2077, %v2111
      %v2128 = vsel %vm2096, %v2051, %v2112
      %v2129 = vsel %vm2097, %v2080, %v2113
      %v2130 = vsel %vm2098, %v2053, %v2114
      %v2131 = vsel %vm2099, %v2082, %v2115
      %s2132 = scalar_lea.vmem %s5, 32
      %v2133 = vld [vmem:[%s2132] sm:$0xf]
      %v2134 = vld [vmem:[%s2132 + $0x4] sm:$0xf]
      %v2135 = vld [vmem:[%s2132 + $0x8] sm:$0xf]
      %v2136 = vld [vmem:[%s2132 + $0xc] sm:$0xf]
      %v2137 = vld [vmem:[%s2132 + $0x10] sm:$0xf]
      %v2138 = vld [vmem:[%s2132 + $0x14] sm:$0xf]
      %v2139 = vld [vmem:[%s2132 + $0x18] sm:$0xf]
      %v2140 = vld [vmem:[%s2132 + $0x1c] sm:$0xf]
      %v2141 = vpack.c.bf16 %v2118, %v2116
      %v2142 = vpack.c.bf16 %v2119, %v2117
      %v2143 = vpack.c.bf16 %v2122, %v2120
      %v2144 = vpack.c.bf16 %v2123, %v2121
      %v2145 = vpack.c.bf16 %v2126, %v2124
      %v2146 = vpack.c.bf16 %v2127, %v2125
      %v2147 = vpack.c.bf16 %v2130, %v2128
      %v2148 = vpack.c.bf16 %v2131, %v2129
      %s2149 = scalar_lea.vmem %s6, 64
      %v2150 = vld [vmem:[%s2149] sm:$0xff]
      %v2151 = vld [vmem:[%s2149 + $0x8] sm:$0xff]
      %v2152 = vld [vmem:[%s2149 + $0x10] sm:$0xff]
      %v2153 = vld [vmem:[%s2149 + $0x18] sm:$0xff]
      %v2154 = vld [vmem:[%s2149 + $0x20] sm:$0xff]
      %v2155 = vld [vmem:[%s2149 + $0x28] sm:$0xff]
      %v2156 = vld [vmem:[%s2149 + $0x30] sm:$0xff]
      %v2157 = vld [vmem:[%s2149 + $0x38] sm:$0xff]
      %2159 = vset.pattern.permute.xlu0 0
      %2160 = vperm.xlu0 %2159, %v2150
      %v2161 = vpop.permute.xlu0 %2160
      %2164 = vset.pattern.permute.xlu0 0
      %2165 = vperm.xlu0 %2164, %v2151
      %v2166 = vpop.permute.xlu0 %2165
      %2169 = vset.pattern.permute.xlu0 0
      %2170 = vperm.xlu0 %2169, %v2152
      %v2171 = vpop.permute.xlu0 %2170
      %2174 = vset.pattern.permute.xlu0 0
      %2175 = vperm.xlu0 %2174, %v2153
      %v2176 = vpop.permute.xlu0 %2175
      %2179 = vset.pattern.permute.xlu0 0
      %2180 = vperm.xlu0 %2179, %v2154
      %v2181 = vpop.permute.xlu0 %2180
      %2184 = vset.pattern.permute.xlu0 0
      %2185 = vperm.xlu0 %2184, %v2155
      %v2186 = vpop.permute.xlu0 %2185
      %2189 = vset.pattern.permute.xlu0 0
      %2190 = vperm.xlu0 %2189, %v2156
      %v2191 = vpop.permute.xlu0 %2190
      %2194 = vset.pattern.permute.xlu0 0
      %2195 = vperm.xlu0 %2194, %v2157
      %v2196 = vpop.permute.xlu0 %2195
      %v2206 = vunpack.c.l.b16 %v2133
      %v2207 = vunpack.c.l.b16 %v2134
      %v2208 = vunpack.c.l.b16 %v2135
      %v2209 = vunpack.c.l.b16 %v2136
      %v2210 = vunpack.c.l.b16 %v2137
      %v2211 = vunpack.c.l.b16 %v2138
      %v2212 = vunpack.c.l.b16 %v2139
      %v2213 = vunpack.c.l.b16 %v2140
      %v2214 = vpack.c.b16 %v2207, %v2206
      %v2215 = vpack.c.b16 %v2209, %v2208
      %v2216 = vpack.c.b16 %v2211, %v2210
      %v2217 = vpack.c.b16 %v2213, %v2212
      %v2219 = vsel %vm2013, %v2214, 0
      %v2222 = vsel %vm2013, %v2215, 0
      %v2225 = vsel %vm2013, %v2216, 0
      %v2228 = vsel %vm2013, %v2217, 0
      %2230 = vmatpush.bf16.msra.mxu0 0
      %2231 = vmatpush.bf16.msra.mxu0 0
      %2232 = vmatpush.bf16.msra.mxu0 0
      %2233 = vmatpush.bf16.msra.mxu0 0
      %2234 = vmatpush.bf16.msra.mxu0 %v2147
      %2235 = vmatpush.bf16.msra.mxu0 %v2145
      %2236 = vmatpush.bf16.msra.mxu0 %v2143
      %2237 = vmatpush.bf16.msra.mxu0 %v2141
      %2238 = vmatmul.bf16.gmra.mxu0 %v2219
      %v2239 = vpop.f32.mrf.mxu0
      %v2240 = vadd.f32 %v2161, %v2239
      %v2241 = vpop.f32.mrf.mxu0
      %v2242 = vadd.f32 %v2166, %v2241
      %2243 = vmatmul.bf16.gmra.mxu0 %v2222
      %v2244 = vpop.f32.mrf.mxu0
      %v2245 = vadd.f32 %v2171, %v2244
      %v2246 = vpop.f32.mrf.mxu0
      %v2247 = vadd.f32 %v2176, %v2246
      %2248 = vmatmul.bf16.gmra.mxu0 %v2225
      %v2249 = vpop.f32.mrf.mxu0
      %v2250 = vadd.f32 %v2181, %v2249
      %v2251 = vpop.f32.mrf.mxu0
      %v2252 = vadd.f32 %v2186, %v2251
      %2253 = vmatmul.bf16.gmra.mxu0 %v2228
      %v2254 = vpop.f32.mrf.mxu0
      %v2255 = vadd.f32 %v2191, %v2254
      %v2256 = vpop.f32.mrf.mxu0
      %v2257 = vadd.f32 %v2196, %v2256
      %2258 = vdwg.mxu0
      %2259 = vmatpush.bf16.msra.mxu0 0
      %2260 = vmatpush.bf16.msra.mxu0 0
      %2261 = vmatpush.bf16.msra.mxu0 0
      %2262 = vmatpush.bf16.msra.mxu0 0
      %2263 = vmatpush.bf16.msra.mxu0 %v2148
      %2264 = vmatpush.bf16.msra.mxu0 %v2146
      %2265 = vmatpush.bf16.msra.mxu0 %v2144
      %2266 = vmatpush.bf16.msra.mxu0 %v2142
      %2267 = vmatmul.bf16.gmra.mxu0 %v2219
      %v2268 = vpop.f32.mrf.mxu0
      %v2269 = vadd.f32 %v2161, %v2268
      %v2270 = vpop.f32.mrf.mxu0
      %v2271 = vadd.f32 %v2166, %v2270
      %2272 = vmatmul.bf16.gmra.mxu0 %v2222
      %v2273 = vpop.f32.mrf.mxu0
      %v2274 = vadd.f32 %v2171, %v2273
      %v2275 = vpop.f32.mrf.mxu0
      %v2276 = vadd.f32 %v2176, %v2275
      %2277 = vmatmul.bf16.gmra.mxu0 %v2225
      %v2278 = vpop.f32.mrf.mxu0
      %v2279 = vadd.f32 %v2181, %v2278
      %v2280 = vpop.f32.mrf.mxu0
      %v2281 = vadd.f32 %v2186, %v2280
      %2282 = vmatmul.bf16.gmra.mxu0 %v2228
      %v2283 = vpop.f32.mrf.mxu0
      %v2284 = vadd.f32 %v2191, %v2283
      %v2285 = vpop.f32.mrf.mxu0
      %v2286 = vadd.f32 %v2196, %v2285
      %2287 = vdwg.mxu0
      %vm2288 = vcmp.ge.f32.partialorder %v2240, 0.0
      %vm2289 = vcmp.ge.f32.partialorder %v2269, 0.0
      %vm2290 = vcmp.ge.f32.partialorder %v2242, 0.0
      %vm2291 = vcmp.ge.f32.partialorder %v2271, 0.0
      %vm2292 = vcmp.ge.f32.partialorder %v2245, 0.0
      %vm2293 = vcmp.ge.f32.partialorder %v2274, 0.0
      %vm2294 = vcmp.ge.f32.partialorder %v2247, 0.0
      %vm2295 = vcmp.ge.f32.partialorder %v2276, 0.0
      %vm2296 = vcmp.ge.f32.partialorder %v2250, 0.0
      %vm2297 = vcmp.ge.f32.partialorder %v2279, 0.0
      %vm2298 = vcmp.ge.f32.partialorder %v2252, 0.0
      %vm2299 = vcmp.ge.f32.partialorder %v2281, 0.0
      %vm2300 = vcmp.ge.f32.partialorder %v2255, 0.0
      %vm2301 = vcmp.ge.f32.partialorder %v2284, 0.0
      %vm2302 = vcmp.ge.f32.partialorder %v2257, 0.0
      %vm2303 = vcmp.ge.f32.partialorder %v2286, 0.0
      %v2304 = vmul.f32 %v2240, 0.01
      %v2305 = vmul.f32 %v2269, 0.01
      %v2306 = vmul.f32 %v2242, 0.01
      %v2307 = vmul.f32 %v2271, 0.01
      %v2308 = vmul.f32 %v2245, 0.01
      %v2309 = vmul.f32 %v2274, 0.01
      %v2310 = vmul.f32 %v2247, 0.01
      %v2311 = vmul.f32 %v2276, 0.01
      %v2312 = vmul.f32 %v2250, 0.01
      %v2313 = vmul.f32 %v2279, 0.01
      %v2314 = vmul.f32 %v2252, 0.01
      %v2315 = vmul.f32 %v2281, 0.01
      %v2316 = vmul.f32 %v2255, 0.01
      %v2317 = vmul.f32 %v2284, 0.01
      %v2318 = vmul.f32 %v2257, 0.01
      %v2319 = vmul.f32 %v2286, 0.01
      %v2320 = vsel %vm2288, %v2240, %v2304
      %v2321 = vsel %vm2289, %v2269, %v2305
      %v2322 = vsel %vm2290, %v2242, %v2306
      %v2323 = vsel %vm2291, %v2271, %v2307
      %v2324 = vsel %vm2292, %v2245, %v2308
      %v2325 = vsel %vm2293, %v2274, %v2309
      %v2326 = vsel %vm2294, %v2247, %v2310
      %v2327 = vsel %vm2295, %v2276, %v2311
      %v2328 = vsel %vm2296, %v2250, %v2312
      %v2329 = vsel %vm2297, %v2279, %v2313
      %v2330 = vsel %vm2298, %v2252, %v2314
      %v2331 = vsel %vm2299, %v2281, %v2315
      %v2332 = vsel %vm2300, %v2255, %v2316
      %v2333 = vsel %vm2301, %v2284, %v2317
      %v2334 = vsel %vm2302, %v2257, %v2318
      %v2335 = vsel %vm2303, %v2286, %v2319
      %s2336 = scalar_lea.vmem %s5, 64
      %v2337 = vld [vmem:[%s2336] sm:$0xf]
      %v2338 = vld [vmem:[%s2336 + $0x4] sm:$0xf]
      %v2339 = vld [vmem:[%s2336 + $0x8] sm:$0xf]
      %v2340 = vld [vmem:[%s2336 + $0xc] sm:$0xf]
      %v2341 = vld [vmem:[%s2336 + $0x10] sm:$0xf]
      %v2342 = vld [vmem:[%s2336 + $0x14] sm:$0xf]
      %v2343 = vld [vmem:[%s2336 + $0x18] sm:$0xf]
      %v2344 = vld [vmem:[%s2336 + $0x1c] sm:$0xf]
      %v2345 = vpack.c.bf16 %v2322, %v2320
      %v2346 = vpack.c.bf16 %v2323, %v2321
      %v2347 = vpack.c.bf16 %v2326, %v2324
      %v2348 = vpack.c.bf16 %v2327, %v2325
      %v2349 = vpack.c.bf16 %v2330, %v2328
      %v2350 = vpack.c.bf16 %v2331, %v2329
      %v2351 = vpack.c.bf16 %v2334, %v2332
      %v2352 = vpack.c.bf16 %v2335, %v2333
      %s2353 = scalar_lea.vmem %s6, 128
      %v2354 = vld [vmem:[%s2353] sm:$0xff]
      %v2355 = vld [vmem:[%s2353 + $0x8] sm:$0xff]
      %v2356 = vld [vmem:[%s2353 + $0x10] sm:$0xff]
      %v2357 = vld [vmem:[%s2353 + $0x18] sm:$0xff]
      %v2358 = vld [vmem:[%s2353 + $0x20] sm:$0xff]
      %v2359 = vld [vmem:[%s2353 + $0x28] sm:$0xff]
      %v2360 = vld [vmem:[%s2353 + $0x30] sm:$0xff]
      %v2361 = vld [vmem:[%s2353 + $0x38] sm:$0xff]
      %2363 = vset.pattern.permute.xlu0 0
      %2364 = vperm.xlu0 %2363, %v2354
      %v2365 = vpop.permute.xlu0 %2364
      %2368 = vset.pattern.permute.xlu0 0
      %2369 = vperm.xlu0 %2368, %v2355
      %v2370 = vpop.permute.xlu0 %2369
      %2373 = vset.pattern.permute.xlu0 0
      %2374 = vperm.xlu0 %2373, %v2356
      %v2375 = vpop.permute.xlu0 %2374
      %2378 = vset.pattern.permute.xlu0 0
      %2379 = vperm.xlu0 %2378, %v2357
      %v2380 = vpop.permute.xlu0 %2379
      %2383 = vset.pattern.permute.xlu0 0
      %2384 = vperm.xlu0 %2383, %v2358
      %v2385 = vpop.permute.xlu0 %2384
      %2388 = vset.pattern.permute.xlu0 0
      %2389 = vperm.xlu0 %2388, %v2359
      %v2390 = vpop.permute.xlu0 %2389
      %2393 = vset.pattern.permute.xlu0 0
      %2394 = vperm.xlu0 %2393, %v2360
      %v2395 = vpop.permute.xlu0 %2394
      %2398 = vset.pattern.permute.xlu0 0
      %2399 = vperm.xlu0 %2398, %v2361
      %v2400 = vpop.permute.xlu0 %2399
      %v2410 = vunpack.c.l.b16 %v2337
      %v2411 = vunpack.c.l.b16 %v2338
      %v2412 = vunpack.c.l.b16 %v2339
      %v2413 = vunpack.c.l.b16 %v2340
      %v2414 = vunpack.c.l.b16 %v2341
      %v2415 = vunpack.c.l.b16 %v2342
      %v2416 = vunpack.c.l.b16 %v2343
      %v2417 = vunpack.c.l.b16 %v2344
      %v2418 = vpack.c.b16 %v2411, %v2410
      %v2419 = vpack.c.b16 %v2413, %v2412
      %v2420 = vpack.c.b16 %v2415, %v2414
      %v2421 = vpack.c.b16 %v2417, %v2416
      %v2423 = vsel %vm2013, %v2418, 0
      %v2426 = vsel %vm2013, %v2419, 0
      %v2429 = vsel %vm2013, %v2420, 0
      %v2432 = vsel %vm2013, %v2421, 0
      %2434 = vmatpush.bf16.msra.mxu0 0
      %2435 = vmatpush.bf16.msra.mxu0 0
      %2436 = vmatpush.bf16.msra.mxu0 0
      %2437 = vmatpush.bf16.msra.mxu0 0
      %2438 = vmatpush.bf16.msra.mxu0 %v2351
      %2439 = vmatpush.bf16.msra.mxu0 %v2349
      %2440 = vmatpush.bf16.msra.mxu0 %v2347
      %2441 = vmatpush.bf16.msra.mxu0 %v2345
      %2442 = vmatmul.bf16.gmra.mxu0 %v2423
      %v2443 = vpop.f32.mrf.mxu0
      %v2444 = vadd.f32 %v2365, %v2443
      %v2445 = vpop.f32.mrf.mxu0
      %v2446 = vadd.f32 %v2370, %v2445
      %2447 = vmatmul.bf16.gmra.mxu0 %v2426
      %v2448 = vpop.f32.mrf.mxu0
      %v2449 = vadd.f32 %v2375, %v2448
      %v2450 = vpop.f32.mrf.mxu0
      %v2451 = vadd.f32 %v2380, %v2450
      %2452 = vmatmul.bf16.gmra.mxu0 %v2429
      %v2453 = vpop.f32.mrf.mxu0
      %v2454 = vadd.f32 %v2385, %v2453
      %v2455 = vpop.f32.mrf.mxu0
      %v2456 = vadd.f32 %v2390, %v2455
      %2457 = vmatmul.bf16.gmra.mxu0 %v2432
      %v2458 = vpop.f32.mrf.mxu0
      %v2459 = vadd.f32 %v2395, %v2458
      %v2460 = vpop.f32.mrf.mxu0
      %v2461 = vadd.f32 %v2400, %v2460
      %2462 = vdwg.mxu0
      %2463 = vmatpush.bf16.msra.mxu0 0
      %2464 = vmatpush.bf16.msra.mxu0 0
      %2465 = vmatpush.bf16.msra.mxu0 0
      %2466 = vmatpush.bf16.msra.mxu0 0
      %2467 = vmatpush.bf16.msra.mxu0 %v2352
      %2468 = vmatpush.bf16.msra.mxu0 %v2350
      %2469 = vmatpush.bf16.msra.mxu0 %v2348
      %2470 = vmatpush.bf16.msra.mxu0 %v2346
      %2471 = vmatmul.bf16.gmra.mxu0 %v2423
      %v2472 = vpop.f32.mrf.mxu0
      %v2473 = vadd.f32 %v2365, %v2472
      %v2474 = vpop.f32.mrf.mxu0
      %v2475 = vadd.f32 %v2370, %v2474
      %2476 = vmatmul.bf16.gmra.mxu0 %v2426
      %v2477 = vpop.f32.mrf.mxu0
      %v2478 = vadd.f32 %v2375, %v2477
      %v2479 = vpop.f32.mrf.mxu0
      %v2480 = vadd.f32 %v2380, %v2479
      %2481 = vmatmul.bf16.gmra.mxu0 %v2429
      %v2482 = vpop.f32.mrf.mxu0
      %v2483 = vadd.f32 %v2385, %v2482
      %v2484 = vpop.f32.mrf.mxu0
      %v2485 = vadd.f32 %v2390, %v2484
      %2486 = vmatmul.bf16.gmra.mxu0 %v2432
      %v2487 = vpop.f32.mrf.mxu0
      %v2488 = vadd.f32 %v2395, %v2487
      %v2489 = vpop.f32.mrf.mxu0
      %v2490 = vadd.f32 %v2400, %v2489
      %2491 = vdwg.mxu0
      %vm2492 = vcmp.ge.f32.partialorder %v2444, 0.0
      %vm2493 = vcmp.ge.f32.partialorder %v2473, 0.0
      %vm2494 = vcmp.ge.f32.partialorder %v2446, 0.0
      %vm2495 = vcmp.ge.f32.partialorder %v2475, 0.0
      %vm2496 = vcmp.ge.f32.partialorder %v2449, 0.0
      %vm2497 = vcmp.ge.f32.partialorder %v2478, 0.0
      %vm2498 = vcmp.ge.f32.partialorder %v2451, 0.0
      %vm2499 = vcmp.ge.f32.partialorder %v2480, 0.0
      %vm2500 = vcmp.ge.f32.partialorder %v2454, 0.0
      %vm2501 = vcmp.ge.f32.partialorder %v2483, 0.0
      %vm2502 = vcmp.ge.f32.partialorder %v2456, 0.0
      %vm2503 = vcmp.ge.f32.partialorder %v2485, 0.0
      %vm2504 = vcmp.ge.f32.partialorder %v2459, 0.0
      %vm2505 = vcmp.ge.f32.partialorder %v2488, 0.0
      %vm2506 = vcmp.ge.f32.partialorder %v2461, 0.0
      %vm2507 = vcmp.ge.f32.partialorder %v2490, 0.0
      %v2508 = vmul.f32 %v2444, 0.01
      %v2509 = vmul.f32 %v2473, 0.01
      %v2510 = vmul.f32 %v2446, 0.01
      %v2511 = vmul.f32 %v2475, 0.01
      %v2512 = vmul.f32 %v2449, 0.01
      %v2513 = vmul.f32 %v2478, 0.01
      %v2514 = vmul.f32 %v2451, 0.01
      %v2515 = vmul.f32 %v2480, 0.01
      %v2516 = vmul.f32 %v2454, 0.01
      %v2517 = vmul.f32 %v2483, 0.01
      %v2518 = vmul.f32 %v2456, 0.01
      %v2519 = vmul.f32 %v2485, 0.01
      %v2520 = vmul.f32 %v2459, 0.01
      %v2521 = vmul.f32 %v2488, 0.01
      %v2522 = vmul.f32 %v2461, 0.01
      %v2523 = vmul.f32 %v2490, 0.01
      %v2524 = vsel %vm2492, %v2444, %v2508
      %v2525 = vsel %vm2493, %v2473, %v2509
      %v2526 = vsel %vm2494, %v2446, %v2510
      %v2527 = vsel %vm2495, %v2475, %v2511
      %v2528 = vsel %vm2496, %v2449, %v2512
      %v2529 = vsel %vm2497, %v2478, %v2513
      %v2530 = vsel %vm2498, %v2451, %v2514
      %v2531 = vsel %vm2499, %v2480, %v2515
      %v2532 = vsel %vm2500, %v2454, %v2516
      %v2533 = vsel %vm2501, %v2483, %v2517
      %v2534 = vsel %vm2502, %v2456, %v2518
      %v2535 = vsel %vm2503, %v2485, %v2519
      %v2536 = vsel %vm2504, %v2459, %v2520
      %v2537 = vsel %vm2505, %v2488, %v2521
      %v2538 = vsel %vm2506, %v2461, %v2522
      %v2539 = vsel %vm2507, %v2490, %v2523
      %v2540 = vld [vmem:[%s7] sm:$0x3]
      %v2541 = vpack.c.bf16 %v2526, %v2524
      %v2542 = vpack.c.bf16 %v2527, %v2525
      %v2543 = vpack.c.bf16 %v2530, %v2528
      %v2544 = vpack.c.bf16 %v2531, %v2529
      %v2545 = vpack.c.bf16 %v2534, %v2532
      %v2546 = vpack.c.bf16 %v2535, %v2533
      %v2547 = vpack.c.bf16 %v2538, %v2536
      %v2548 = vpack.c.bf16 %v2539, %v2537
      %v2549 = vld [vmem:[%s8] sm:$0x7]
      %2551 = vset.pattern.permute.xlu0 0
      %2552 = vperm.xlu0 %2551, %v2549
      %v2553 = vpop.permute.xlu0 %2552
      %v2556 = vsel %vm2013, %v2540, 0
      %2558 = vmatpush.bf16.msra.mxu0 0
      %2559 = vmatpush.bf16.msra.mxu0 0
      %2560 = vmatpush.bf16.msra.mxu0 0
      %2561 = vmatpush.bf16.msra.mxu0 0
      %2562 = vmatpush.bf16.msra.mxu0 %v2547
      %2563 = vmatpush.bf16.msra.mxu0 %v2545
      %2564 = vmatpush.bf16.msra.mxu0 %v2543
      %2565 = vmatpush.bf16.msra.mxu0 %v2541
      %2566 = vmatmul.bf16.gmra.mxu0 %v2556
      %v2567 = vpop.f32.mrf.mxu0
      %v2568 = vadd.f32 %v2553, %v2567
      %v2569 = vpop.f32.mrf.mxu0
      %2570 = vdwg.mxu0
      %2571 = vmatpush.bf16.msra.mxu0 0
      %2572 = vmatpush.bf16.msra.mxu0 0
      %2573 = vmatpush.bf16.msra.mxu0 0
      %2574 = vmatpush.bf16.msra.mxu0 0
      %2575 = vmatpush.bf16.msra.mxu0 %v2548
      %2576 = vmatpush.bf16.msra.mxu0 %v2546
      %2577 = vmatpush.bf16.msra.mxu0 %v2544
      %2578 = vmatpush.bf16.msra.mxu0 %v2542
      %2579 = vmatmul.bf16.gmra.mxu0 %v2556
      %v2580 = vpop.f32.mrf.mxu0
      %v2581 = vadd.f32 %v2553, %v2580
      %v2582 = vpop.f32.mrf.mxu0
      %2583 = vdwg.mxu0
      %v2586 = vrot.slane %v2581, 4
      %vm2587 = vcmask 1043456
      %v2588 = vsel %vm2587, %v2568, %v2586
      %2590 = vst [vmem:[%s370] sm:$0x77] %v2588
      %s2591 = smul.u32 2, %s25
      %p2592 = scmp.lt.s32.totalorder %s24, 1
      %s2593 = scalar_select %p2592, %s24, 1
      %p2594 = scmp.lt.s32.totalorder %s2591, 1
      %s2595 = scalar_select %p2594, %s2591, 1
      %s2596 = smul.addr %s2593, 2
      %s2597 = sadd.s32 %s2595, %s2596
      %s2598 = smul.addr %s2597, 4
      %s2599 = scalar_lea.vmem %s9, %s2598
      // Predicated region
      $region57: #{tpu_custom_call.1} parent=55 // pred_check
        %p2600 = pneg %p248
      $region58: #{tpu_custom_call.1} parent=55 // pred_check_branch
        %2602 = sbr.rel (%p2600) target = $region60
      $region59: #{tpu_custom_call.1} parent=55 // pred_region
        %s2603 = smul.u32 2, %s25
      $region60: #{tpu_custom_call.1} parent=55 // pred_fallthru
        _
    $region56: #{tpu_custom_call.1} parent=5 // pred_fallthru
      _
    %p2604 = scmp.le.s32.totalorder 2, %s15
    // Predicated region
    $region61: #{tpu_custom_call.1} parent=5 // pred_check
      %p2605 = pneg %p2604
    $region62: #{tpu_custom_call.1} parent=5 // pred_check_branch
      %2607 = sbr.rel (%p2605) target = $region64
    $region63: #{tpu_custom_call.1} parent=5 // pred_region
      %s2608 = ssub.s32 %s15, 2
      // Predicated region
      $region65: #{tpu_custom_call.1} parent=63 // pred_check
        %p2609 = pneg %p254
      $region66: #{tpu_custom_call.1} parent=63 // pred_check_branch
        %2611 = sbr.rel (%p2609) target = $region68
      $region67: #{tpu_custom_call.1} parent=63 // pred_region
        %s2612 = smul.u32 2, %s27
        %p2613 = scmp.lt.s32.totalorder %s26, 1
        %s2614 = scalar_select %p2613, %s26, 1
        %p2615 = scmp.lt.s32.totalorder %s2612, 1
        %s2616 = scalar_select %p2615, %s2612, 1
        %s2617 = smul.addr %s2614, 2
        %s2618 = sadd.s32 %s2616, %s2617
        %s2619 = smul.addr %s2618, 4
        %s2620 = scalar_lea.vmem %s9, %s2619
      $region68: #{tpu_custom_call.1} parent=63 // pred_fallthru
        _
    $region64: #{tpu_custom_call.1} parent=5 // pred_fallthru
      _
  $region6: #{tpu_custom_call.1} parent=0 // loop_footer
    %s19 = sadd.s32 1, %s15
  $region7: #{tpu_custom_call.1} parent=0 // loop_footer_branch
    %14 = sbr.rel target = $region3
  $region8: #{tpu_custom_call.1} parent=0 // loop_exit
    _

</llo_original>
